<compile_context>
chip_gen: v6e
topology: v6e:2x2x1
jax: 0.10.0
libtpu: 0.0.40
codegen_flags: <defaults>
</compile_context>

<pallas_src>
import jax
import jax.numpy as jnp
from jax.experimental import pallas as pl
from jax.experimental.pallas import tpu as pltpu


def _vgg19_block_kernel(xm_ref, xh_ref, w1_ref, b1_ref, w2_ref, b2_ref, o_ref):
    """Fused Conv1(3x3)+ReLU -> Conv2(3x3)+ReLU for one (image, row-strip).

    xm_ref : (1, S, W+2, CP)  bf16  padded input rows [h*S, h*S+S)
    xh_ref : (1, 4, W+2, CP)  bf16  padded input rows [h*S+S, h*S+S+4) (halo)
    w1_ref : (9*CP, C1)       bf16  conv1 weights, (ky, kx, ci) flattened
    b1_ref : (1, C1)          f32
    w2_ref : (9*C1, C1)       bf16  conv2 weights, (ky, kx, ci) flattened
    b2_ref : (1, C1)          f32
    o_ref  : (1, S, W, C1)    bf16  ReLU(conv2) output rows [h*S, h*S+S)
    """
    S, W, C1 = o_ref.shape[1], o_ref.shape[2], o_ref.shape[3]
    h = pl.program_id(1)
    n_strips = pl.num_programs(1)

    # Input slab for this strip: S+4 padded rows (2-row halo at each end).
    slab = jnp.concatenate([xm_ref[0], xh_ref[0]], axis=0)      # (S+4, W+2, CP)

    # ---- conv1 + ReLU: one K = 9*CP matmul over an in-VMEM 3x3 patch ----
    taps1 = [slab[ky:ky + S + 2, kx:kx + W, :]
             for ky in range(3) for kx in range(3)]
    patch1 = jnp.concatenate(taps1, axis=-1)                    # (S+2, W, 9*CP)
    y1 = jax.lax.dot_general(
        patch1, w1_ref[...],
        dimension_numbers=(((2,), (0,)), ((), ())),
        preferred_element_type=jnp.float32)                     # (S+2, W, C1) f32
    y1 = jnp.maximum(y1 + b1_ref[0], 0.0)

    # Halo rows that fall outside the image are conv2's SAME zero-padding,
    # not conv1 evaluated out of bounds -> mask them to zero.
    row = jax.lax.broadcasted_iota(jnp.int32, (S + 2, 1, 1), 0) + (h * S - 1)
    y1 = jnp.where((row >= 0) & (row < n_strips * S), y1, 0.0)

    # ---- conv2 + ReLU: zero-pad width, fold all 9 taps into one K=9*C1 ----
    y1 = y1.astype(w2_ref.dtype)
    zcol = jnp.zeros((S + 2, 1, C1), y1.dtype)
    y1p = jnp.concatenate([zcol, y1, zcol], axis=1)             # (S+2, W+2, C1)
    taps2 = [y1p[ky:ky + S, kx:kx + W, :]
             for ky in range(3) for kx in range(3)]
    patch2 = jnp.concatenate(taps2, axis=-1)                    # (S, W, 9*C1)
    y2 = jax.lax.dot_general(
        patch2, w2_ref[...],
        dimension_numbers=(((2,), (0,)), ((), ())),
        preferred_element_type=jnp.float32)                     # (S, W, C1) f32
    y2 = jnp.maximum(y2 + b2_ref[0], 0.0)

    # TODO(synk): lane-dense (S, W*C1) store once Mosaic reliably lowers the
    # minor-dim merging reshape; kept NHWC blocks (64-lane masked stores).
    o_ref[0] = y2.astype(o_ref.dtype)


def _pick_strip_rows(H, target=32):
    """Largest divisor of H that is <= target and gives at least 2 strips."""
    best = None
    for s in range(1, min(target, H) + 1):
        if H % s == 0 and (H // s) >= 2:
            best = s
    return best if best is not None else H


def _pick_vmem_limit():
    """Per-generation VMEM request with headroom (v7x has only 64 MiB / TC)."""
    cap = 128 * 1024 * 1024
    try:
        cap = int(getattr(pltpu.get_tpu_info(), "vmem_capacity_bytes", cap))
    except Exception:
        pass
    return min(64 * 1024 * 1024, (3 * cap) // 4)


def vgg19_forward(x_nchw, params, compute_dtype=jnp.bfloat16, strip_rows=None):
    """Mirrors VGG19.forward: returns [ReLU(Conv2(ReLU(Conv1(x))))] in NCHW."""
    (w1, b1), (w2, b2) = params
    N, Cin, H, W = x_nchw.shape
    C1 = w1.shape[-1]
    CP = max(8, -(-Cin // 8) * 8)                      # channel pad (3 -> 8)

    S = strip_rows if strip_rows is not None else _pick_strip_rows(H)
    assert H % S == 0, (H, S)
    NH = H // S

    # NCHW -> NHWC; 2-row / 1-col zero halo + channel pad, bf16 (tiny in HBM).
    x = jnp.transpose(x_nchw, (0, 2, 3, 1))
    xp = jnp.pad(x, ((0, 0), (2, 2), (1, 1), (0, CP - Cin))).astype(compute_dtype)
    xm = xp[:, :H]                                     # (N, H, W+2, CP)
    # Per-strip 4-row bottom halo, flattened to (N*NH, 4, W+2, CP) so the grid
    # fetches it with plain non-overlapping blocks (keeps auto-pipelining).
    xh = jnp.stack([xp[:, (hh + 1) * S:(hh + 1) * S + 4] for hh in range(NH)],
                   axis=1).reshape(N * NH, 4, W + 2, CP)

    w1f = jnp.pad(w1, ((0, 0), (0, 0), (0, CP - Cin), (0, 0)))
    w1f = w1f.reshape(9 * CP, C1).astype(compute_dtype)
    w2f = w2.reshape(9 * C1, C1).astype(compute_dtype)
    b1r = b1.reshape(1, C1).astype(jnp.float32)
    b2r = b2.reshape(1, C1).astype(jnp.float32)

    out = pl.pallas_call(
        _vgg19_block_kernel,
        out_shape=jax.ShapeDtypeStruct((N, H, W, C1), compute_dtype),
        grid_spec=pltpu.PrefetchScalarGridSpec(
            num_scalar_prefetch=0,
            grid=(N, NH),
            in_specs=[
                pl.BlockSpec((1, S, W + 2, CP), lambda n, h: (n, h, 0, 0)),
                pl.BlockSpec((1, 4, W + 2, CP),
                             lambda n, h: (n * NH + h, 0, 0, 0)),
                pl.BlockSpec((9 * CP, C1), lambda n, h: (0, 0)),
                pl.BlockSpec((1, C1), lambda n, h: (0, 0)),
                pl.BlockSpec((9 * C1, C1), lambda n, h: (0, 0)),
                pl.BlockSpec((1, C1), lambda n, h: (0, 0)),
            ],
            out_specs=pl.BlockSpec((1, S, W, C1), lambda n, h: (n, h, 0, 0)),
        ),
        compiler_params=pltpu.CompilerParams(
            dimension_semantics=("parallel", "parallel"),
            vmem_limit_bytes=_pick_vmem_limit(),
        ),
    )(xm, xh, w1f, b1r, w2f, b2r)

    # bf16 NHWC -> f32 NCHW in one fused XLA transpose+convert pass.
    return [jnp.transpose(out, (0, 3, 1, 2)).astype(jnp.float32)]


def _ref_vgg19_block(x_nchw, params, compute_dtype=jnp.bfloat16):
    """XLA reference with the same bf16-operand / f32-accumulate pipeline."""
    (w1, b1), (w2, b2) = params
    x = jnp.transpose(x_nchw, (0, 2, 3, 1)).astype(compute_dtype)

    def conv_relu(hh, w, b):
        y = jax.lax.conv_general_dilated(
            hh, w.astype(compute_dtype), window_strides=(1, 1), padding="SAME",
            dimension_numbers=("NHWC", "HWIO", "NHWC"),
            preferred_element_type=jnp.float32)
        return jnp.maximum(y + b.astype(jnp.float32), 0.0)

    y1 = conv_relu(x, w1, b1).astype(compute_dtype)
    y2 = conv_relu(y1, w2, b2)
    return jnp.transpose(y2, (0, 3, 1, 2))


if __name__ == "__main__":
    key = jax.random.PRNGKey(0)
    kx, kw1, kb1, kw2, kb2 = jax.random.split(key, 5)

    N, Cin, H, W = 2, 3, 16, 16          # VGG19 takes 3-channel images
    C1 = 64                              # first two conv layers of VGG19

    x = jax.random.normal(kx, (N, Cin, H, W), dtype=jnp.float32)
    # Deterministic synthetic weights (VGG19 layer shapes, HWIO layout).
    w1 = 0.1 * jax.random.normal(kw1, (3, 3, Cin, C1), dtype=jnp.float32)
    b1 = 0.1 * jax.random.normal(kb1, (C1,), dtype=jnp.float32)
    w2 = 0.05 * jax.random.normal(kw2, (3, 3, C1, C1), dtype=jnp.float32)
    b2 = 0.1 * jax.random.normal(kb2, (C1,), dtype=jnp.float32)
    params = ((w1, b1), (w2, b2))

    fwd = jax.jit(lambda xx: vgg19_forward(xx, params))
    feats = fwd(x)
    out = jax.block_until_ready(feats[0])
    assert out.shape == (N, C1, H, W), out.shape

    # Cross-check the fused Pallas kernel against the XLA conv reference.
    ref = _ref_vgg19_block(x, params)
    err = float(jnp.max(jnp.abs(out - ref)))
    assert jnp.allclose(out, ref, atol=3e-2, rtol=3e-2), err

    print("KERNEL_OK")
</pallas_src>

<mosaic_0001>
module attributes {stable_mosaic.version = 11 : i64} {
  func.func @_vgg19_block_kernel(%arg0: i32, %arg1: i32, %arg2: memref<1x8x18x8xbf16, #tpu.memory_space<vmem>>, %arg3: memref<1x4x18x8xbf16, #tpu.memory_space<vmem>>, %arg4: memref<72x64xbf16, #tpu.memory_space<vmem>>, %arg5: memref<1x64xf32, #tpu.memory_space<vmem>>, %arg6: memref<576x64xbf16, #tpu.memory_space<vmem>>, %arg7: memref<1x64xf32, #tpu.memory_space<vmem>>, %arg8: memref<1x8x16x64xbf16, #tpu.memory_space<vmem>>) attributes {dimension_semantics = [#tpu.dimension_semantics<parallel>, #tpu.dimension_semantics<parallel>], iteration_bounds = array<i64: 2, 2>, scalar_prefetch = 0 : i64, scratch_operands = 0 : i64, tpu.core_type = #tpu.core_type<tc>, window_params = [{transform_indices = @transform_0, window_bounds = array<i64: 1, 8, 18, 8>}, {transform_indices = @transform_1, window_bounds = array<i64: 1, 4, 18, 8>}, {pipeline_mode = #tpu.pipeline_mode<synchronous>, transform_indices = @transform_2, window_bounds = array<i64: 72, 64>}, {pipeline_mode = #tpu.pipeline_mode<synchronous>, transform_indices = @transform_3, window_bounds = array<i64: 1, 64>}, {pipeline_mode = #tpu.pipeline_mode<synchronous>, transform_indices = @transform_4, window_bounds = array<i64: 576, 64>}, {pipeline_mode = #tpu.pipeline_mode<synchronous>, transform_indices = @transform_5, window_bounds = array<i64: 1, 64>}, {transform_indices = @transform_6, window_bounds = array<i64: 1, 8, 16, 64>}]} {
    %c0 = arith.constant 0 : index
    %c0_0 = arith.constant 0 : index
    %c0_1 = arith.constant 0 : index
    %c0_2 = arith.constant 0 : index
    %0 = vector.load %arg2[%c0, %c0_0, %c0_1, %c0_2] : memref<1x8x18x8xbf16, #tpu.memory_space<vmem>>, vector<1x8x18x8xbf16>
    %1 = vector.shape_cast %0 : vector<1x8x18x8xbf16> to vector<8x18x8xbf16>
    %c0_3 = arith.constant 0 : index
    %c0_4 = arith.constant 0 : index
    %c0_5 = arith.constant 0 : index
    %c0_6 = arith.constant 0 : index
    %2 = vector.load %arg3[%c0_3, %c0_4, %c0_5, %c0_6] : memref<1x4x18x8xbf16, #tpu.memory_space<vmem>>, vector<1x4x18x8xbf16>
    %3 = vector.shape_cast %2 : vector<1x4x18x8xbf16> to vector<4x18x8xbf16>
    %4 = tpu.concatenate %1, %3 in 0 : vector<8x18x8xbf16>, vector<4x18x8xbf16> -> vector<12x18x8xbf16>
    %5 = vector.extract_strided_slice %4 {offsets = [0, 0, 0], sizes = [10, 16, 8], strides = [1, 1, 1]} : vector<12x18x8xbf16> to vector<10x16x8xbf16>
    %6 = vector.extract_strided_slice %4 {offsets = [0, 1, 0], sizes = [10, 16, 8], strides = [1, 1, 1]} : vector<12x18x8xbf16> to vector<10x16x8xbf16>
    %7 = vector.extract_strided_slice %4 {offsets = [0, 2, 0], sizes = [10, 16, 8], strides = [1, 1, 1]} : vector<12x18x8xbf16> to vector<10x16x8xbf16>
    %8 = vector.extract_strided_slice %4 {offsets = [1, 0, 0], sizes = [10, 16, 8], strides = [1, 1, 1]} : vector<12x18x8xbf16> to vector<10x16x8xbf16>
    %9 = vector.extract_strided_slice %4 {offsets = [1, 1, 0], sizes = [10, 16, 8], strides = [1, 1, 1]} : vector<12x18x8xbf16> to vector<10x16x8xbf16>
    %10 = vector.extract_strided_slice %4 {offsets = [1, 2, 0], sizes = [10, 16, 8], strides = [1, 1, 1]} : vector<12x18x8xbf16> to vector<10x16x8xbf16>
    %11 = vector.extract_strided_slice %4 {offsets = [2, 0, 0], sizes = [10, 16, 8], strides = [1, 1, 1]} : vector<12x18x8xbf16> to vector<10x16x8xbf16>
    %12 = vector.extract_strided_slice %4 {offsets = [2, 1, 0], sizes = [10, 16, 8], strides = [1, 1, 1]} : vector<12x18x8xbf16> to vector<10x16x8xbf16>
    %13 = vector.extract_strided_slice %4 {offsets = [2, 2, 0], sizes = [10, 16, 8], strides = [1, 1, 1]} : vector<12x18x8xbf16> to vector<10x16x8xbf16>
    %14 = tpu.concatenate %5, %6, %7, %8, %9, %10, %11, %12, %13 in 2 : vector<10x16x8xbf16>, vector<10x16x8xbf16>, vector<10x16x8xbf16>, vector<10x16x8xbf16>, vector<10x16x8xbf16>, vector<10x16x8xbf16>, vector<10x16x8xbf16>, vector<10x16x8xbf16>, vector<10x16x8xbf16> -> vector<10x16x72xbf16>
    %c0_7 = arith.constant 0 : index
    %c0_8 = arith.constant 0 : index
    %15 = vector.load %arg4[%c0_7, %c0_8] : memref<72x64xbf16, #tpu.memory_space<vmem>>, vector<72x64xbf16>
    %cst = arith.constant dense<0.000000e+00> : vector<10x16x64xf32>
    %16 = tpu.matmul %14, %15, %cst {dimension_numbers = #tpu.dot_dimension_numbers<[2], [0], [0, 1], [1], [0, 0, 0, 1, 1, 1], [], []>} : vector<10x16x72xbf16>, vector<72x64xbf16>, vector<10x16x64xf32> -> vector<10x16x64xf32>
    %c0_9 = arith.constant 0 : index
    %c0_10 = arith.constant 0 : index
    %17 = vector.load %arg5[%c0_9, %c0_10] : memref<1x64xf32, #tpu.memory_space<vmem>>, vector<1x64xf32>
    %18 = vector.shape_cast %17 : vector<1x64xf32> to vector<64xf32>
    %19 = vector.shape_cast %18 : vector<64xf32> to vector<1x1x64xf32>
    %20 = vector.broadcast %19 : vector<1x1x64xf32> to vector<10x16x64xf32>
    %21 = arith.addf %16, %20 : vector<10x16x64xf32>
    %cst_11 = arith.constant 0.000000e+00 : f32
    %22 = vector.broadcast %cst_11 : f32 to vector<10x16x64xf32>
    %23 = arith.maximumf %21, %22 : vector<10x16x64xf32>
    %24 = tpu.iota {dimensions = array<i32: 0>} : vector<10x1x1xi32>
    %c8_i32 = arith.constant 8 : i32
    %25 = arith.muli %arg1, %c8_i32 : i32
    %c1_i32 = arith.constant 1 : i32
    %26 = arith.subi %25, %c1_i32 : i32
    %27 = vector.broadcast %26 : i32 to vector<10x1x1xi32>
    %28 = arith.addi %24, %27 : vector<10x1x1xi32>
    %c0_i32 = arith.constant 0 : i32
    %29 = vector.broadcast %c0_i32 : i32 to vector<10x1x1xi32>
    %30 = arith.cmpi sge, %28, %29 : vector<10x1x1xi32>
    %c16_i32 = arith.constant 16 : i32
    %31 = vector.broadcast %c16_i32 : i32 to vector<10x1x1xi32>
    %32 = arith.cmpi slt, %28, %31 : vector<10x1x1xi32>
    %33 = arith.andi %30, %32 : vector<10x1x1xi1>
    %cst_12 = arith.constant 0.000000e+00 : f32
    %34 = vector.shape_cast %33 : vector<10x1x1xi1> to vector<10x1x1xi1>
    %35 = vector.broadcast %34 : vector<10x1x1xi1> to vector<10x16x64xi1>
    %36 = vector.broadcast %cst_12 : f32 to vector<10x16x64xf32>
    %37 = arith.select %35, %23, %36 : vector<10x16x64xi1>, vector<10x16x64xf32>
    %38 = arith.truncf %37 : vector<10x16x64xf32> to vector<10x16x64xbf16>
    %cst_13 = arith.constant 0.000000e+00 : bf16
    %39 = vector.broadcast %cst_13 : bf16 to vector<10x1x64xbf16>
    %40 = tpu.concatenate %39, %38, %39 in 1 : vector<10x1x64xbf16>, vector<10x16x64xbf16>, vector<10x1x64xbf16> -> vector<10x18x64xbf16>
    %41 = vector.extract_strided_slice %40 {offsets = [0, 0, 0], sizes = [8, 16, 64], strides = [1, 1, 1]} : vector<10x18x64xbf16> to vector<8x16x64xbf16>
    %42 = vector.extract_strided_slice %40 {offsets = [0, 1, 0], sizes = [8, 16, 64], strides = [1, 1, 1]} : vector<10x18x64xbf16> to vector<8x16x64xbf16>
    %43 = vector.extract_strided_slice %40 {offsets = [0, 2, 0], sizes = [8, 16, 64], strides = [1, 1, 1]} : vector<10x18x64xbf16> to vector<8x16x64xbf16>
    %44 = vector.extract_strided_slice %40 {offsets = [1, 0, 0], sizes = [8, 16, 64], strides = [1, 1, 1]} : vector<10x18x64xbf16> to vector<8x16x64xbf16>
    %45 = vector.extract_strided_slice %40 {offsets = [1, 1, 0], sizes = [8, 16, 64], strides = [1, 1, 1]} : vector<10x18x64xbf16> to vector<8x16x64xbf16>
    %46 = vector.extract_strided_slice %40 {offsets = [1, 2, 0], sizes = [8, 16, 64], strides = [1, 1, 1]} : vector<10x18x64xbf16> to vector<8x16x64xbf16>
    %47 = vector.extract_strided_slice %40 {offsets = [2, 0, 0], sizes = [8, 16, 64], strides = [1, 1, 1]} : vector<10x18x64xbf16> to vector<8x16x64xbf16>
    %48 = vector.extract_strided_slice %40 {offsets = [2, 1, 0], sizes = [8, 16, 64], strides = [1, 1, 1]} : vector<10x18x64xbf16> to vector<8x16x64xbf16>
    %49 = vector.extract_strided_slice %40 {offsets = [2, 2, 0], sizes = [8, 16, 64], strides = [1, 1, 1]} : vector<10x18x64xbf16> to vector<8x16x64xbf16>
    %50 = tpu.concatenate %41, %42, %43, %44, %45, %46, %47, %48, %49 in 2 : vector<8x16x64xbf16>, vector<8x16x64xbf16>, vector<8x16x64xbf16>, vector<8x16x64xbf16>, vector<8x16x64xbf16>, vector<8x16x64xbf16>, vector<8x16x64xbf16>, vector<8x16x64xbf16>, vector<8x16x64xbf16> -> vector<8x16x576xbf16>
    %c0_14 = arith.constant 0 : index
    %c0_15 = arith.constant 0 : index
    %51 = vector.load %arg6[%c0_14, %c0_15] : memref<576x64xbf16, #tpu.memory_space<vmem>>, vector<576x64xbf16>
    %cst_16 = arith.constant dense<0.000000e+00> : vector<8x16x64xf32>
    %52 = tpu.matmul %50, %51, %cst_16 {dimension_numbers = #tpu.dot_dimension_numbers<[2], [0], [0, 1], [1], [0, 0, 0, 1, 1, 1], [], []>} : vector<8x16x576xbf16>, vector<576x64xbf16>, vector<8x16x64xf32> -> vector<8x16x64xf32>
    %c0_17 = arith.constant 0 : index
    %c0_18 = arith.constant 0 : index
    %53 = vector.load %arg7[%c0_17, %c0_18] : memref<1x64xf32, #tpu.memory_space<vmem>>, vector<1x64xf32>
    %54 = vector.shape_cast %53 : vector<1x64xf32> to vector<64xf32>
    %55 = vector.shape_cast %54 : vector<64xf32> to vector<1x1x64xf32>
    %56 = vector.broadcast %55 : vector<1x1x64xf32> to vector<8x16x64xf32>
    %57 = arith.addf %52, %56 : vector<8x16x64xf32>
    %cst_19 = arith.constant 0.000000e+00 : f32
    %58 = vector.broadcast %cst_19 : f32 to vector<8x16x64xf32>
    %59 = arith.maximumf %57, %58 : vector<8x16x64xf32>
    %60 = arith.truncf %59 : vector<8x16x64xf32> to vector<8x16x64xbf16>
    %c0_20 = arith.constant 0 : index
    %c0_21 = arith.constant 0 : index
    %c0_22 = arith.constant 0 : index
    %c0_23 = arith.constant 0 : index
    %61 = vector.load %arg8[%c0_20, %c0_21, %c0_22, %c0_23] : memref<1x8x16x64xbf16, #tpu.memory_space<vmem>>, vector<1x8x16x64xbf16>
    %62 = vector.shape_cast %61 : vector<1x8x16x64xbf16> to vector<8x16x64xbf16>
    %63 = vector.shape_cast %60 : vector<8x16x64xbf16> to vector<1x8x16x64xbf16>
    tpu.vector_store %arg8[%c0_20, %c0_21, %c0_22, %c0_23], %63 {strides = array<i32>} : memref<1x8x16x64xbf16, #tpu.memory_space<vmem>>, vector<1x8x16x64xbf16>,
    return
  }
  func.func @transform_0(%arg0: i32, %arg1: i32) -> (i32, i32, i32, i32) {
    %c0_i32 = arith.constant 0 : i32
    %c0_i32_0 = arith.constant 0 : i32
    %c0_i32_1 = arith.constant 0 : i32
    return %arg0, %arg1, %c0_i32, %c0_i32_0 : i32, i32, i32, i32
  }
  func.func @transform_1(%arg0: i32, %arg1: i32) -> (i32, i32, i32, i32) {
    %c2_i32 = arith.constant 2 : i32
    %0 = arith.muli %arg0, %c2_i32 : i32
    %1 = arith.addi %0, %arg1 : i32
    %c0_i32 = arith.constant 0 : i32
    %c0_i32_0 = arith.constant 0 : i32
    %c0_i32_1 = arith.constant 0 : i32
    %c0_i32_2 = arith.constant 0 : i32
    return %1, %c0_i32, %c0_i32_0, %c0_i32_1 : i32, i32, i32, i32
  }
  func.func @transform_2(%arg0: i32, %arg1: i32) -> (i32, i32) {
    %c0_i32 = arith.constant 0 : i32
    %c0_i32_0 = arith.constant 0 : i32
    %c0_i32_1 = arith.constant 0 : i32
    return %c0_i32, %c0_i32_0 : i32, i32
  }
  func.func @transform_3(%arg0: i32, %arg1: i32) -> (i32, i32) {
    %c0_i32 = arith.constant 0 : i32
    %c0_i32_0 = arith.constant 0 : i32
    %c0_i32_1 = arith.constant 0 : i32
    return %c0_i32, %c0_i32_0 : i32, i32
  }
  func.func @transform_4(%arg0: i32, %arg1: i32) -> (i32, i32) {
    %c0_i32 = arith.constant 0 : i32
    %c0_i32_0 = arith.constant 0 : i32
    %c0_i32_1 = arith.constant 0 : i32
    return %c0_i32, %c0_i32_0 : i32, i32
  }
  func.func @transform_5(%arg0: i32, %arg1: i32) -> (i32, i32) {
    %c0_i32 = arith.constant 0 : i32
    %c0_i32_0 = arith.constant 0 : i32
    %c0_i32_1 = arith.constant 0 : i32
    return %c0_i32, %c0_i32_0 : i32, i32
  }
  func.func @transform_6(%arg0: i32, %arg1: i32) -> (i32, i32, i32, i32) {
    %c0_i32 = arith.constant 0 : i32
    %c0_i32_0 = arith.constant 0 : i32
    %c0_i32_1 = arith.constant 0 : i32
    return %arg0, %arg1, %c0_i32, %c0_i32_0 : i32, i32, i32, i32
  }
}

</mosaic_0001>

<llo_original>
// kernel: _lambda_.1
$region0: #{_lambda_.1}
  #allocation0 [shape = 'u32[]', space=smem, size = 0x4, offset = 0x4, fixed_abs, tag = 'smem constant byte address 0x4 - core index']
  #allocation1 [shape = 'u32[144,128]{1,0:T(1,128)}', space=vmem, size = 0x12000, scoped, tag = 'internal scratch']
  %s0 = inlined_call_operand.vmem [shape: bf16[2,16,18,8], index: 0, kind: input, shape index: {}]
  %s1 = inlined_call_operand.vmem [shape: bf16[4,4,18,8], index: 1, kind: input, shape index: {}]
  %s2 = inlined_call_operand.vmem [shape: bf16[72,64], index: 2, kind: input, shape index: {}]
  %s3 = inlined_call_operand.vmem [shape: f32[1,64], index: 3, kind: input, shape index: {}]
  %s4 = inlined_call_operand.vmem [shape: bf16[576,64], index: 4, kind: input, shape index: {}]
  %s5 = inlined_call_operand.vmem [shape: f32[1,64], index: 5, kind: input, shape index: {}]
  %s6 = inlined_call_operand.vmem [shape: bf16[2,16,16,64], index: 6, kind: output, shape index: {}]
  %s7 = sld [smem:[#allocation0]]
  $region57: #{_lambda_.1} parent=0
    _
  %s9 = ssub.s32 1, %s7
  %s10 = scalar_select 0, %s9, %s7
  loop: start=0, step=1, limit=6
  $region2: #{_lambda_.1} parent=0 // loop_pre_header
    _
  $region3: #{_lambda_.1} parent=0 // loop_header
    %s12 = sphi 0, %s16
    %p13 = scmp.ge.s32.totalorder %s12, 6
    %s19 = sphi 0, %s31
    %s20 = sphi 0, %s27
    %s21 = sphi 0, %s19
    %s22 = sphi 0, %s20
    %s23 = sphi 0, %s21
    %s24 = sphi 0, %s22
    %s36 = sphi 0, %s38
    %s39 = sphi 0, %s36
    %s40 = sphi 0, %s39
    %s56 = sphi 0, %s40
    %s66 = sphi 0, %s68
    %s69 = sphi 0, %s66
    %s70 = sphi 0, %s69
    %s86 = sphi 0, %s70
    %s90 = sphi 0, %s90
    %s92 = sphi 0, %s90
    %s93 = sphi 0, %s92
    %s107 = sphi 0, %s93
    %s111 = sphi 0, %s111
    %s113 = sphi 0, %s111
    %s114 = sphi 0, %s113
    %s128 = sphi 0, %s114
    %s132 = sphi 0, %s132
    %s134 = sphi 0, %s132
    %s135 = sphi 0, %s134
    %s149 = sphi 0, %s135
    %s153 = sphi 0, %s153
    %s155 = sphi 0, %s153
    %s156 = sphi 0, %s155
    %s170 = sphi 0, %s156
    %s178 = sphi 0, %s180
    %s181 = sphi 0, %s178
    %s182 = sphi 0, %s181
    %s198 = sphi 0, %s182
  $region4: #{_lambda_.1} parent=0 // loop_header_branch
    %15 = sbr.rel (%p13) target = $region8
  $region5: #{_lambda_.1} parent=0 // loop_body
    %s17 = ssub.s32 %s12, 1
    %s18 = ssub.s32 %s12, 2
    %s25 = sadd.s32 1, %s20
    %p26 = scmp.ge.s32.totalorder %s25, 2
    %s27 = scalar_select %p26, 0, %s25
    %s28 = sadd.s32 1, %s19
    %s29 = scalar_select %p26, %s28, %s19
    %p30 = scmp.ge.s32.totalorder %s29, 2
    %s31 = scalar_select %p30, 0, %s29
    %s32 = ssub.s32 %s19, %s31
    %s33 = ssub.s32 %s20, %s27
    %s34 = sor.u32 %s32, %s33
    %p35 = scmp.eq.s32.totalorder %s34, 0
    %s37 = sadd.s32 %s36, 1
    %s38 = scalar_select %p35, %s36, %s37
    %p41 = pneg %p35
    %p42 = scmp.eq.s32.totalorder %s12, 3
    %p43 = por %p41, %p42
    %p44 = scmp.ne.s32.totalorder %s36, %s39
    %p45 = scmp.eq.s32.totalorder %s12, 0
    %p46 = por %p44, %p45
    %p47 = scmp.ne.s32.totalorder %s36, %s39
    %p48 = scmp.eq.s32.totalorder %s17, 3
    %p49 = por %p47, %p48
    %p50 = scmp.ne.s32.totalorder %s39, %s40
    %p51 = scmp.eq.s32.totalorder %s17, 0
    %p52 = por %p50, %p51
    %p53 = scmp.ne.s32.totalorder %s39, %s40
    %p54 = scmp.eq.s32.totalorder %s18, 3
    %p55 = por %p53, %p54
    %p57 = scmp.ne.s32.totalorder %s40, %s56
    %p58 = scmp.eq.s32.totalorder %s18, 0
    %p59 = por %p57, %p58
    %s60 = smul.u32 %s19, 2
    %s61 = sadd.s32 %s60, %s20
    %s62 = smul.u32 %s31, 2
    %s63 = sadd.s32 %s62, %s27
    %s64 = ssub.s32 %s61, %s63
    %p65 = scmp.eq.s32.totalorder %s64, 0
    %s67 = sadd.s32 %s66, 1
    %s68 = scalar_select %p65, %s66, %s67
    %p71 = pneg %p65
    %p72 = scmp.eq.s32.totalorder %s12, 3
    %p73 = por %p71, %p72
    %p74 = scmp.ne.s32.totalorder %s66, %s69
    %p75 = scmp.eq.s32.totalorder %s12, 0
    %p76 = por %p74, %p75
    %p77 = scmp.ne.s32.totalorder %s66, %s69
    %p78 = scmp.eq.s32.totalorder %s17, 3
    %p79 = por %p77, %p78
    %p80 = scmp.ne.s32.totalorder %s69, %s70
    %p81 = scmp.eq.s32.totalorder %s17, 0
    %p82 = por %p80, %p81
    %p83 = scmp.ne.s32.totalorder %s69, %s70
    %p84 = scmp.eq.s32.totalorder %s18, 3
    %p85 = por %p83, %p84
    %p87 = scmp.ne.s32.totalorder %s70, %s86
    %p88 = scmp.eq.s32.totalorder %s18, 0
    %p89 = por %p87, %p88
    %s91 = sadd.s32 %s90, 1
    %p94 = scmp.eq.s32.totalorder %s12, 3
    %p95 = scmp.ne.s32.totalorder %s90, %s92
    %p96 = scmp.eq.s32.totalorder %s12, 0
    %p97 = por %p95, %p96
    %p98 = scmp.ne.s32.totalorder %s90, %s92
    %p99 = scmp.eq.s32.totalorder %s17, 3
    %p100 = por %p98, %p99
    %p101 = scmp.ne.s32.totalorder %s92, %s93
    %p102 = scmp.eq.s32.totalorder %s17, 0
    %p103 = por %p101, %p102
    %p104 = scmp.ne.s32.totalorder %s92, %s93
    %p105 = scmp.eq.s32.totalorder %s18, 3
    %p106 = por %p104, %p105
    %p108 = scmp.ne.s32.totalorder %s93, %s107
    %p109 = scmp.eq.s32.totalorder %s18, 0
    %p110 = por %p108, %p109
    %s112 = sadd.s32 %s111, 1
    %p115 = scmp.eq.s32.totalorder %s12, 3
    %p116 = scmp.ne.s32.totalorder %s111, %s113
    %p117 = scmp.eq.s32.totalorder %s12, 0
    %p118 = por %p116, %p117
    %p119 = scmp.ne.s32.totalorder %s111, %s113
    %p120 = scmp.eq.s32.totalorder %s17, 3
    %p121 = por %p119, %p120
    %p122 = scmp.ne.s32.totalorder %s113, %s114
    %p123 = scmp.eq.s32.totalorder %s17, 0
    %p124 = por %p122, %p123
    %p125 = scmp.ne.s32.totalorder %s113, %s114
    %p126 = scmp.eq.s32.totalorder %s18, 3
    %p127 = por %p125, %p126
    %p129 = scmp.ne.s32.totalorder %s114, %s128
    %p130 = scmp.eq.s32.totalorder %s18, 0
    %p131 = por %p129, %p130
    %s133 = sadd.s32 %s132, 1
    %p136 = scmp.eq.s32.totalorder %s12, 3
    %p137 = scmp.ne.s32.totalorder %s132, %s134
    %p138 = scmp.eq.s32.totalorder %s12, 0
    %p139 = por %p137, %p138
    %p140 = scmp.ne.s32.totalorder %s132, %s134
    %p141 = scmp.eq.s32.totalorder %s17, 3
    %p142 = por %p140, %p141
    %p143 = scmp.ne.s32.totalorder %s134, %s135
    %p144 = scmp.eq.s32.totalorder %s17, 0
    %p145 = por %p143, %p144
    %p146 = scmp.ne.s32.totalorder %s134, %s135
    %p147 = scmp.eq.s32.totalorder %s18, 3
    %p148 = por %p146, %p147
    %p150 = scmp.ne.s32.totalorder %s135, %s149
    %p151 = scmp.eq.s32.totalorder %s18, 0
    %p152 = por %p150, %p151
    %s154 = sadd.s32 %s153, 1
    %p157 = scmp.eq.s32.totalorder %s12, 3
    %p158 = scmp.ne.s32.totalorder %s153, %s155
    %p159 = scmp.eq.s32.totalorder %s12, 0
    %p160 = por %p158, %p159
    %p161 = scmp.ne.s32.totalorder %s153, %s155
    %p162 = scmp.eq.s32.totalorder %s17, 3
    %p163 = por %p161, %p162
    %p164 = scmp.ne.s32.totalorder %s155, %s156
    %p165 = scmp.eq.s32.totalorder %s17, 0
    %p166 = por %p164, %p165
    %p167 = scmp.ne.s32.totalorder %s155, %s156
    %p168 = scmp.eq.s32.totalorder %s18, 3
    %p169 = por %p167, %p168
    %p171 = scmp.ne.s32.totalorder %s156, %s170
    %p172 = scmp.eq.s32.totalorder %s18, 0
    %p173 = por %p171, %p172
    %s174 = ssub.s32 %s19, %s31
    %s175 = ssub.s32 %s20, %s27
    %s176 = sor.u32 %s174, %s175
    %p177 = scmp.eq.s32.totalorder %s176, 0
    %s179 = sadd.s32 %s178, 1
    %s180 = scalar_select %p177, %s178, %s179
    %p183 = pneg %p177
    %p184 = scmp.eq.s32.totalorder %s12, 3
    %p185 = por %p183, %p184
    %p186 = scmp.ne.s32.totalorder %s178, %s181
    %p187 = scmp.eq.s32.totalorder %s12, 0
    %p188 = por %p186, %p187
    %p189 = scmp.ne.s32.totalorder %s178, %s181
    %p190 = scmp.eq.s32.totalorder %s17, 3
    %p191 = por %p189, %p190
    %p192 = scmp.ne.s32.totalorder %s181, %s182
    %p193 = scmp.eq.s32.totalorder %s17, 0
    %p194 = por %p192, %p193
    %p195 = scmp.ne.s32.totalorder %s181, %s182
    %p196 = scmp.eq.s32.totalorder %s18, 3
    %p197 = por %p195, %p196
    %p199 = scmp.ne.s32.totalorder %s182, %s198
    %p200 = scmp.eq.s32.totalorder %s18, 0
    %p201 = por %p199, %p200
    %p202 = scmp.le.s32.totalorder 1, %s12
    %p203 = scmp.lt.s32.totalorder %s12, 5
    %p204 = pnand %p202, %p203
    %p205 = pneg %p204
    // Predicated region
    $region9: #{_lambda_.1} parent=5 // pred_check
      _
    $region10: #{_lambda_.1} parent=5 // pred_check_branch
      %207 = sbr.rel (%p204) target = $region12
    $region11: #{_lambda_.1} parent=5 // pred_region
      %s208 = ssub.s32 %s12, 1
      // Predicated region
      $region13: #{_lambda_.1} parent=11 // pred_check
        %p209 = pneg %p103
      $region14: #{_lambda_.1} parent=11 // pred_check_branch
        %211 = sbr.rel (%p209) target = $region16
      $region15: #{_lambda_.1} parent=11 // pred_region
        _
      $region16: #{_lambda_.1} parent=11 // pred_fallthru
        _
      // Predicated region
      $region17: #{_lambda_.1} parent=11 // pred_check
        %p212 = pneg %p124
      $region18: #{_lambda_.1} parent=11 // pred_check_branch
        %214 = sbr.rel (%p212) target = $region20
      $region19: #{_lambda_.1} parent=11 // pred_region
        _
      $region20: #{_lambda_.1} parent=11 // pred_fallthru
        _
      // Predicated region
      $region21: #{_lambda_.1} parent=11 // pred_check
        %p215 = pneg %p145
      $region22: #{_lambda_.1} parent=11 // pred_check_branch
        %217 = sbr.rel (%p215) target = $region24
      $region23: #{_lambda_.1} parent=11 // pred_region
        _
      $region24: #{_lambda_.1} parent=11 // pred_fallthru
        _
      // Predicated region
      $region25: #{_lambda_.1} parent=11 // pred_check
        %p218 = pneg %p166
      $region26: #{_lambda_.1} parent=11 // pred_check_branch
        %220 = sbr.rel (%p218) target = $region28
      $region27: #{_lambda_.1} parent=11 // pred_region
        _
      $region28: #{_lambda_.1} parent=11 // pred_fallthru
        _
    $region12: #{_lambda_.1} parent=5 // pred_fallthru
      _
    %p221 = scmp.lt.s32.totalorder %s12, 4
    // Predicated region
    $region29: #{_lambda_.1} parent=5 // pred_check
      %p222 = pneg %p221
    $region30: #{_lambda_.1} parent=5 // pred_check_branch
      %224 = sbr.rel (%p222) target = $region32
    $region31: #{_lambda_.1} parent=5 // pred_region
      // Predicated region
      $region33: #{_lambda_.1} parent=31 // pred_check
        %p225 = pneg %p46
      $region34: #{_lambda_.1} parent=31 // pred_check_branch
        %227 = sbr.rel (%p225) target = $region36
      $region35: #{_lambda_.1} parent=31 // pred_region
        %s228 = smul.u32 8, %s20
        %p229 = scmp.lt.s32.totalorder %s19, 1
        %s230 = scalar_select %p229, %s19, 1
        %p231 = scmp.lt.s32.totalorder %s228, 15
        %s232 = scalar_select %p231, %s228, 15
        %s233 = smul.addr %s232, 3
        %s234 = smul.addr %s230, 48
        %s235 = sadd.s32 %s233, %s234
        %s236 = smul.addr %s235, 4
        %s237 = scalar_lea.vmem %s0, %s236
        %s238 = smul.u32 8, %s20
      $region36: #{_lambda_.1} parent=31 // pred_fallthru
        _
      // Predicated region
      $region37: #{_lambda_.1} parent=31 // pred_check
        %p239 = pneg %p76
      $region38: #{_lambda_.1} parent=31 // pred_check_branch
        %241 = sbr.rel (%p239) target = $region40
      $region39: #{_lambda_.1} parent=31 // pred_region
        %s242 = smul.u32 %s19, 2
        %s243 = sadd.s32 %s242, %s20
        %p244 = scmp.lt.s32.totalorder %s243, 3
        %s245 = scalar_select %p244, %s243, 3
        %s246 = smul.addr %s245, 12
        %s247 = smul.addr %s246, 4
        %s248 = scalar_lea.vmem %s1, %s247
        %s249 = smul.u32 %s19, 2
        %s250 = sadd.s32 %s249, %s20
      $region40: #{_lambda_.1} parent=31 // pred_fallthru
        _
    $region32: #{_lambda_.1} parent=5 // pred_fallthru
      _
    %p251 = scmp.le.s32.totalorder 1, %s12
    %p252 = scmp.lt.s32.totalorder %s12, 5
    %p253 = pnand %p251, %p252
    %p254 = pneg %p253
    // Predicated region
    $region41: #{_lambda_.1} parent=5 // pred_check
      _
    $region42: #{_lambda_.1} parent=5 // pred_check_branch
      %256 = sbr.rel (%p253) target = $region44
    $region43: #{_lambda_.1} parent=5 // pred_region
      %s257 = ssub.s32 %s12, 1
      %s258 = smul.u32 8, %s22
      %p259 = scmp.lt.s32.totalorder %s21, 1
      %s260 = scalar_select %p259, %s21, 1
      %p261 = scmp.lt.s32.totalorder %s258, 15
      %s262 = scalar_select %p261, %s258, 15
      %s263 = smul.addr %s262, 3
      %s264 = smul.addr %s260, 48
      %s265 = sadd.s32 %s263, %s264
      %s266 = smul.addr %s265, 4
      %s267 = scalar_lea.vmem %s0, %s266
      %p268 = pneg %p52
      %p269 = pneg %p49
      %s270 = smul.u32 %s21, 2
      %s271 = sadd.s32 %s270, %s22
      %p272 = scmp.lt.s32.totalorder %s271, 3
      %s273 = scalar_select %p272, %s271, 3
      %s274 = smul.addr %s273, 12
      %s275 = smul.addr %s274, 4
      %s276 = scalar_lea.vmem %s1, %s275
      %p277 = pneg %p82
      %p278 = pneg %p79
      %p279 = pneg %p103
      %p280 = pneg %p100
      %p281 = pneg %p124
      %p282 = pneg %p121
      %p283 = pneg %p145
      %p284 = pneg %p142
      %p285 = pneg %p166
      %p286 = pneg %p163
      %p287 = pneg %p194
      %p288 = pneg %p191
      %s289 = smul.u32 8, %s22
      %p290 = scmp.lt.s32.totalorder %s21, 1
      %s291 = scalar_select %p290, %s21, 1
      %p292 = scmp.lt.s32.totalorder %s289, 15
      %s293 = scalar_select %p292, %s289, 15
      %s294 = smul.addr %s293, 2
      %s295 = smul.addr %s291, 32
      %s296 = sadd.s32 %s294, %s295
      %s297 = smul.addr %s296, 4
      %s298 = scalar_lea.vmem %s6, %s297
      %s299 = smul.u32 8, %s22
      %p300 = scmp.lt.s32.totalorder %s21, 1
      %s301 = scalar_select %p300, %s21, 1
      %p302 = scmp.lt.s32.totalorder %s299, 15
      %s303 = scalar_select %p302, %s299, 15
      %s304 = smul.addr %s303, 3
      %s305 = smul.addr %s301, 48
      %s306 = sadd.s32 %s304, %s305
      %s307 = smul.addr %s306, 4
      %s308 = scalar_lea.vmem %s0, %s307
      %s309 = smul.u32 8, %s22
      %s310 = smul.u32 %s21, 2
      %s311 = sadd.s32 %s310, %s22
      %p312 = scmp.lt.s32.totalorder %s311, 3
      %s313 = scalar_select %p312, %s311, 3
      %s314 = smul.addr %s313, 12
      %s315 = smul.addr %s314, 4
      %s316 = scalar_lea.vmem %s1, %s315
      %s317 = smul.u32 %s21, 2
      %s318 = sadd.s32 %s317, %s22
      %s319 = smul.u32 8, %s22
      %p320 = scmp.lt.s32.totalorder %s21, 1
      %s321 = scalar_select %p320, %s21, 1
      %p322 = scmp.lt.s32.totalorder %s319, 15
      %s323 = scalar_select %p322, %s319, 15
      %s324 = smul.addr %s323, 2
      %s325 = smul.addr %s321, 32
      %s326 = sadd.s32 %s324, %s325
      %s327 = smul.addr %s326, 4
      %s328 = scalar_lea.vmem %s6, %s327
      %s329 = smul.u32 8, %s22
      %v331 = vld [vmem:[%s308] sm:$0xf]
      %v332 = vld [vmem:[%s308 + $0x4] sm:$0xf]
      %v333 = vld [vmem:[%s308 + $0x8] sm:$0x1]
      %v334 = vld [vmem:[%s308 + $0xc] sm:$0xf]
      %v335 = vld [vmem:[%s308 + $0x10] sm:$0xf]
      %v336 = vld [vmem:[%s308 + $0x14] sm:$0x1]
      %v337 = vld [vmem:[%s308 + $0x18] sm:$0xf]
      %v338 = vld [vmem:[%s308 + $0x1c] sm:$0xf]
      %v339 = vld [vmem:[%s308 + $0x20] sm:$0x1]
      %v340 = vld [vmem:[%s308 + $0x24] sm:$0xf]
      %v341 = vld [vmem:[%s308 + $0x28] sm:$0xf]
      %v342 = vld [vmem:[%s308 + $0x2c] sm:$0x1]
      %v343 = vld [vmem:[%s308 + $0x30] sm:$0xf]
      %v344 = vld [vmem:[%s308 + $0x34] sm:$0xf]
      %v345 = vld [vmem:[%s308 + $0x38] sm:$0x1]
      %v346 = vld [vmem:[%s308 + $0x3c] sm:$0xf]
      %v347 = vld [vmem:[%s308 + $0x40] sm:$0xf]
      %v348 = vld [vmem:[%s308 + $0x44] sm:$0x1]
      %v349 = vld [vmem:[%s308 + $0x48] sm:$0xf]
      %v350 = vld [vmem:[%s308 + $0x4c] sm:$0xf]
      %v351 = vld [vmem:[%s308 + $0x50] sm:$0x1]
      %v352 = vld [vmem:[%s308 + $0x54] sm:$0xf]
      %v353 = vld [vmem:[%s308 + $0x58] sm:$0xf]
      %v354 = vld [vmem:[%s308 + $0x5c] sm:$0x1]
      %v355 = vld [vmem:[%s316] sm:$0xf]
      %v356 = vld [vmem:[%s316 + $0x4] sm:$0xf]
      %v357 = vld [vmem:[%s316 + $0x8] sm:$0x1]
      %v358 = vld [vmem:[%s316 + $0xc] sm:$0xf]
      %v359 = vld [vmem:[%s316 + $0x10] sm:$0xf]
      %v360 = vld [vmem:[%s316 + $0x14] sm:$0x1]
      %v361 = vld [vmem:[%s316 + $0x18] sm:$0xf]
      %v362 = vld [vmem:[%s316 + $0x1c] sm:$0xf]
      %v363 = vld [vmem:[%s316 + $0x20] sm:$0x1]
      %v364 = vld [vmem:[%s316 + $0x24] sm:$0xf]
      %v365 = vld [vmem:[%s316 + $0x28] sm:$0xf]
      %v366 = vld [vmem:[%s316 + $0x2c] sm:$0x1]
      %v387 = vunpack.c.l.b16 %v331
      %v388 = vunpack.c.l.b16 %v332
      %v389 = vunpack.c.l.b16 %v334
      %v390 = vunpack.c.l.b16 %v335
      %v391 = vunpack.c.l.b16 %v337
      %v392 = vunpack.c.l.b16 %v338
      %v393 = vunpack.c.l.b16 %v340
      %v394 = vunpack.c.l.b16 %v341
      %v395 = vunpack.c.l.b16 %v343
      %v396 = vunpack.c.l.b16 %v344
      %v397 = vunpack.c.l.b16 %v346
      %v398 = vunpack.c.l.b16 %v347
      %v399 = vunpack.c.l.b16 %v349
      %v400 = vunpack.c.l.b16 %v350
      %v401 = vunpack.c.l.b16 %v352
      %v402 = vunpack.c.l.b16 %v353
      %v403 = vunpack.c.l.b16 %v355
      %v404 = vunpack.c.l.b16 %v356
      %v405 = vunpack.c.l.b16 %v358
      %v406 = vunpack.c.l.b16 %v359
      %v407 = vpack.c.b16 %v388, %v387
      %v408 = vpack.c.b16 %v390, %v389
      %v409 = vpack.c.b16 %v392, %v391
      %v410 = vpack.c.b16 %v394, %v393
      %v411 = vpack.c.b16 %v396, %v395
      %v412 = vpack.c.b16 %v398, %v397
      %v413 = vpack.c.b16 %v400, %v399
      %v414 = vpack.c.b16 %v402, %v401
      %v415 = vpack.c.b16 %v404, %v403
      %v416 = vpack.c.b16 %v406, %v405
      %v427 = vunpack.c.l.b16 %v333
      %v428 = vunpack.c.l.b16 %v336
      %v429 = vunpack.c.l.b16 %v339
      %v430 = vunpack.c.l.b16 %v342
      %v431 = vunpack.c.l.b16 %v345
      %v432 = vunpack.c.l.b16 %v348
      %v433 = vunpack.c.l.b16 %v351
      %v434 = vunpack.c.l.b16 %v354
      %v435 = vunpack.c.l.b16 %v357
      %v436 = vunpack.c.l.b16 %v360
      %v437 = vpack.c.b16 %v427, %v427
      %v438 = vpack.c.b16 %v428, %v428
      %v439 = vpack.c.b16 %v429, %v429
      %v440 = vpack.c.b16 %v430, %v430
      %v441 = vpack.c.b16 %v431, %v431
      %v442 = vpack.c.b16 %v432, %v432
      %v443 = vpack.c.b16 %v433, %v433
      %v444 = vpack.c.b16 %v434, %v434
      %v445 = vpack.c.b16 %v435, %v435
      %v446 = vpack.c.b16 %v436, %v436
      %vm447 = vsmask.f32 7424
      %v449 = vshrl.u32 %v407, 16
      %v451 = vshll.u32 %v407, 16
      %v453 = vrot.slane %v451, 1
      %v454 = vor.u32 %v449, %v453
      %v456 = vshll.u32 %v437, 16
      %v458 = vrot.slane %v456, 1
      %v459 = vsel %vm447, %v454, %v458
      %v461 = vshrl.u32 %v408, 16
      %v463 = vshll.u32 %v408, 16
      %v465 = vrot.slane %v463, 1
      %v466 = vor.u32 %v461, %v465
      %v468 = vshll.u32 %v438, 16
      %v470 = vrot.slane %v468, 1
      %v471 = vsel %vm447, %v466, %v470
      %v473 = vshrl.u32 %v409, 16
      %v475 = vshll.u32 %v409, 16
      %v477 = vrot.slane %v475, 1
      %v478 = vor.u32 %v473, %v477
      %v480 = vshll.u32 %v439, 16
      %v482 = vrot.slane %v480, 1
      %v483 = vsel %vm447, %v478, %v482
      %v485 = vshrl.u32 %v410, 16
      %v487 = vshll.u32 %v410, 16
      %v489 = vrot.slane %v487, 1
      %v490 = vor.u32 %v485, %v489
      %v492 = vshll.u32 %v440, 16
      %v494 = vrot.slane %v492, 1
      %v495 = vsel %vm447, %v490, %v494
      %v497 = vshrl.u32 %v411, 16
      %v499 = vshll.u32 %v411, 16
      %v501 = vrot.slane %v499, 1
      %v502 = vor.u32 %v497, %v501
      %v504 = vshll.u32 %v441, 16
      %v506 = vrot.slane %v504, 1
      %v507 = vsel %vm447, %v502, %v506
      %v509 = vshrl.u32 %v412, 16
      %v511 = vshll.u32 %v412, 16
      %v513 = vrot.slane %v511, 1
      %v514 = vor.u32 %v509, %v513
      %v516 = vshll.u32 %v442, 16
      %v518 = vrot.slane %v516, 1
      %v519 = vsel %vm447, %v514, %v518
      %v521 = vshrl.u32 %v413, 16
      %v523 = vshll.u32 %v413, 16
      %v525 = vrot.slane %v523, 1
      %v526 = vor.u32 %v521, %v525
      %v528 = vshll.u32 %v443, 16
      %v530 = vrot.slane %v528, 1
      %v531 = vsel %vm447, %v526, %v530
      %v533 = vshrl.u32 %v414, 16
      %v535 = vshll.u32 %v414, 16
      %v537 = vrot.slane %v535, 1
      %v538 = vor.u32 %v533, %v537
      %v540 = vshll.u32 %v444, 16
      %v542 = vrot.slane %v540, 1
      %v543 = vsel %vm447, %v538, %v542
      %v545 = vshrl.u32 %v415, 16
      %v547 = vshll.u32 %v415, 16
      %v549 = vrot.slane %v547, 1
      %v550 = vor.u32 %v545, %v549
      %v552 = vshll.u32 %v445, 16
      %v554 = vrot.slane %v552, 1
      %v555 = vsel %vm447, %v550, %v554
      %v557 = vshrl.u32 %v416, 16
      %v559 = vshll.u32 %v416, 16
      %v561 = vrot.slane %v559, 1
      %v562 = vor.u32 %v557, %v561
      %v564 = vshll.u32 %v446, 16
      %v566 = vrot.slane %v564, 1
      %v567 = vsel %vm447, %v562, %v566
      %568 = vrot.lane.b32.xlu0 %v459, 8
      %v569 = vpop.permute.xlu0 %568
      %570 = vrot.lane.b32.xlu0 %v471, 8
      %v571 = vpop.permute.xlu0 %570
      %572 = vrot.lane.b32.xlu0 %v483, 8
      %v573 = vpop.permute.xlu0 %572
      %574 = vrot.lane.b32.xlu0 %v495, 8
      %v575 = vpop.permute.xlu0 %574
      %576 = vrot.lane.b32.xlu0 %v507, 8
      %v577 = vpop.permute.xlu0 %576
      %578 = vrot.lane.b32.xlu0 %v519, 8
      %v579 = vpop.permute.xlu0 %578
      %580 = vrot.lane.b32.xlu0 %v531, 8
      %v581 = vpop.permute.xlu0 %580
      %582 = vrot.lane.b32.xlu0 %v543, 8
      %v583 = vpop.permute.xlu0 %582
      %584 = vrot.lane.b32.xlu0 %v555, 8
      %v585 = vpop.permute.xlu0 %584
      %586 = vrot.lane.b32.xlu0 %v567, 8
      %v587 = vpop.permute.xlu0 %586
      %vm588 = vcmask 1046528
      %v589 = vrot.slane %v407, 1
      %v590 = vrot.slane %v437, 1
      %v591 = vsel %vm588, %v589, %v590
      %v592 = vrot.slane %v408, 1
      %v593 = vrot.slane %v438, 1
      %v594 = vsel %vm588, %v592, %v593
      %v595 = vrot.slane %v409, 1
      %v596 = vrot.slane %v439, 1
      %v597 = vsel %vm588, %v595, %v596
      %v598 = vrot.slane %v410, 1
      %v599 = vrot.slane %v440, 1
      %v600 = vsel %vm588, %v598, %v599
      %v601 = vrot.slane %v411, 1
      %v602 = vrot.slane %v441, 1
      %v603 = vsel %vm588, %v601, %v602
      %v604 = vrot.slane %v412, 1
      %v605 = vrot.slane %v442, 1
      %v606 = vsel %vm588, %v604, %v605
      %v607 = vrot.slane %v413, 1
      %v608 = vrot.slane %v443, 1
      %v609 = vsel %vm588, %v607, %v608
      %v610 = vrot.slane %v414, 1
      %v611 = vrot.slane %v444, 1
      %v612 = vsel %vm588, %v610, %v611
      %v613 = vrot.slane %v415, 1
      %v614 = vrot.slane %v445, 1
      %v615 = vsel %vm588, %v613, %v614
      %v616 = vrot.slane %v416, 1
      %v617 = vrot.slane %v446, 1
      %v618 = vsel %vm588, %v616, %v617
      %619 = vrot.lane.b32.xlu0 %v591, 16
      %v620 = vpop.permute.xlu0 %619
      %621 = vrot.lane.b32.xlu0 %v594, 16
      %v622 = vpop.permute.xlu0 %621
      %623 = vrot.lane.b32.xlu0 %v597, 16
      %v624 = vpop.permute.xlu0 %623
      %625 = vrot.lane.b32.xlu0 %v600, 16
      %v626 = vpop.permute.xlu0 %625
      %627 = vrot.lane.b32.xlu0 %v603, 16
      %v628 = vpop.permute.xlu0 %627
      %629 = vrot.lane.b32.xlu0 %v606, 16
      %v630 = vpop.permute.xlu0 %629
      %631 = vrot.lane.b32.xlu0 %v609, 16
      %v632 = vpop.permute.xlu0 %631
      %633 = vrot.lane.b32.xlu0 %v612, 16
      %v634 = vpop.permute.xlu0 %633
      %635 = vrot.lane.b32.xlu0 %v615, 16
      %v636 = vpop.permute.xlu0 %635
      %637 = vrot.lane.b32.xlu0 %v618, 16
      %v638 = vpop.permute.xlu0 %637
      %v641 = vunpack.c.l.b16 %v361
      %v642 = vunpack.c.l.b16 %v362
      %v643 = vpack.c.b16 %v642, %v641
      %644 = vrot.lane.b32.xlu0 %v408, 24
      %v645 = vpop.permute.xlu0 %644
      %646 = vrot.lane.b32.xlu0 %v409, 24
      %v647 = vpop.permute.xlu0 %646
      %648 = vrot.lane.b32.xlu0 %v410, 24
      %v649 = vpop.permute.xlu0 %648
      %650 = vrot.lane.b32.xlu0 %v411, 24
      %v651 = vpop.permute.xlu0 %650
      %652 = vrot.lane.b32.xlu0 %v412, 24
      %v653 = vpop.permute.xlu0 %652
      %654 = vrot.lane.b32.xlu0 %v413, 24
      %v655 = vpop.permute.xlu0 %654
      %656 = vrot.lane.b32.xlu0 %v414, 24
      %v657 = vpop.permute.xlu0 %656
      %658 = vrot.lane.b32.xlu0 %v415, 24
      %v659 = vpop.permute.xlu0 %658
      %660 = vrot.lane.b32.xlu0 %v416, 24
      %v661 = vpop.permute.xlu0 %660
      %662 = vrot.lane.b32.xlu0 %v643, 24
      %v663 = vpop.permute.xlu0 %662
      %v665 = vunpack.c.l.b16 %v363
      %v666 = vpack.c.b16 %v665, %v665
      %v668 = vshrl.u32 %v643, 16
      %v670 = vshll.u32 %v643, 16
      %v672 = vrot.slane %v670, 1
      %v673 = vor.u32 %v668, %v672
      %v675 = vshll.u32 %v666, 16
      %v677 = vrot.slane %v675, 1
      %v678 = vsel %vm447, %v673, %v677
      %679 = vrot.lane.b32.xlu0 %v471, 32
      %v680 = vpop.permute.xlu0 %679
      %681 = vrot.lane.b32.xlu0 %v483, 32
      %v682 = vpop.permute.xlu0 %681
      %683 = vrot.lane.b32.xlu0 %v495, 32
      %v684 = vpop.permute.xlu0 %683
      %685 = vrot.lane.b32.xlu0 %v507, 32
      %v686 = vpop.permute.xlu0 %685
      %687 = vrot.lane.b32.xlu0 %v519, 32
      %v688 = vpop.permute.xlu0 %687
      %689 = vrot.lane.b32.xlu0 %v531, 32
      %v690 = vpop.permute.xlu0 %689
      %691 = vrot.lane.b32.xlu0 %v543, 32
      %v692 = vpop.permute.xlu0 %691
      %693 = vrot.lane.b32.xlu0 %v555, 32
      %v694 = vpop.permute.xlu0 %693
      %695 = vrot.lane.b32.xlu0 %v567, 32
      %v696 = vpop.permute.xlu0 %695
      %697 = vrot.lane.b32.xlu0 %v678, 32
      %v698 = vpop.permute.xlu0 %697
      %v699 = vrot.slane %v643, 1
      %v700 = vrot.slane %v666, 1
      %v701 = vsel %vm588, %v699, %v700
      %702 = vrot.lane.b32.xlu0 %v594, 40
      %v703 = vpop.permute.xlu0 %702
      %704 = vrot.lane.b32.xlu0 %v597, 40
      %v705 = vpop.permute.xlu0 %704
      %706 = vrot.lane.b32.xlu0 %v600, 40
      %v707 = vpop.permute.xlu0 %706
      %708 = vrot.lane.b32.xlu0 %v603, 40
      %v709 = vpop.permute.xlu0 %708
      %710 = vrot.lane.b32.xlu0 %v606, 40
      %v711 = vpop.permute.xlu0 %710
      %712 = vrot.lane.b32.xlu0 %v609, 40
      %v713 = vpop.permute.xlu0 %712
      %714 = vrot.lane.b32.xlu0 %v612, 40
      %v715 = vpop.permute.xlu0 %714
      %716 = vrot.lane.b32.xlu0 %v615, 40
      %v717 = vpop.permute.xlu0 %716
      %718 = vrot.lane.b32.xlu0 %v618, 40
      %v719 = vpop.permute.xlu0 %718
      %720 = vrot.lane.b32.xlu0 %v701, 40
      %v721 = vpop.permute.xlu0 %720
      %v724 = vunpack.c.l.b16 %v364
      %v725 = vunpack.c.l.b16 %v365
      %v726 = vpack.c.b16 %v725, %v724
      %727 = vrot.lane.b32.xlu0 %v409, 48
      %v728 = vpop.permute.xlu0 %727
      %729 = vrot.lane.b32.xlu0 %v410, 48
      %v730 = vpop.permute.xlu0 %729
      %731 = vrot.lane.b32.xlu0 %v411, 48
      %v732 = vpop.permute.xlu0 %731
      %733 = vrot.lane.b32.xlu0 %v412, 48
      %v734 = vpop.permute.xlu0 %733
      %735 = vrot.lane.b32.xlu0 %v413, 48
      %v736 = vpop.permute.xlu0 %735
      %737 = vrot.lane.b32.xlu0 %v414, 48
      %v738 = vpop.permute.xlu0 %737
      %739 = vrot.lane.b32.xlu0 %v415, 48
      %v740 = vpop.permute.xlu0 %739
      %741 = vrot.lane.b32.xlu0 %v416, 48
      %v742 = vpop.permute.xlu0 %741
      %743 = vrot.lane.b32.xlu0 %v643, 48
      %v744 = vpop.permute.xlu0 %743
      %745 = vrot.lane.b32.xlu0 %v726, 48
      %v746 = vpop.permute.xlu0 %745
      %v748 = vunpack.c.l.b16 %v366
      %v749 = vpack.c.b16 %v748, %v748
      %v751 = vshrl.u32 %v726, 16
      %v753 = vshll.u32 %v726, 16
      %v755 = vrot.slane %v753, 1
      %v756 = vor.u32 %v751, %v755
      %v758 = vshll.u32 %v749, 16
      %v760 = vrot.slane %v758, 1
      %v761 = vsel %vm447, %v756, %v760
      %762 = vrot.lane.b32.xlu0 %v483, 56
      %v763 = vpop.permute.xlu0 %762
      %764 = vrot.lane.b32.xlu0 %v495, 56
      %v765 = vpop.permute.xlu0 %764
      %766 = vrot.lane.b32.xlu0 %v507, 56
      %v767 = vpop.permute.xlu0 %766
      %768 = vrot.lane.b32.xlu0 %v519, 56
      %v769 = vpop.permute.xlu0 %768
      %770 = vrot.lane.b32.xlu0 %v531, 56
      %v771 = vpop.permute.xlu0 %770
      %772 = vrot.lane.b32.xlu0 %v543, 56
      %v773 = vpop.permute.xlu0 %772
      %774 = vrot.lane.b32.xlu0 %v555, 56
      %v775 = vpop.permute.xlu0 %774
      %776 = vrot.lane.b32.xlu0 %v567, 56
      %v777 = vpop.permute.xlu0 %776
      %778 = vrot.lane.b32.xlu0 %v678, 56
      %v779 = vpop.permute.xlu0 %778
      %780 = vrot.lane.b32.xlu0 %v761, 56
      %v781 = vpop.permute.xlu0 %780
      %v782 = vrot.slane %v726, 1
      %v783 = vrot.slane %v749, 1
      %v784 = vsel %vm588, %v782, %v783
      %785 = vrot.lane.b32.xlu0 %v597, 64
      %v786 = vpop.permute.xlu0 %785
      %787 = vrot.lane.b32.xlu0 %v600, 64
      %v788 = vpop.permute.xlu0 %787
      %789 = vrot.lane.b32.xlu0 %v603, 64
      %v790 = vpop.permute.xlu0 %789
      %791 = vrot.lane.b32.xlu0 %v606, 64
      %v792 = vpop.permute.xlu0 %791
      %793 = vrot.lane.b32.xlu0 %v609, 64
      %v794 = vpop.permute.xlu0 %793
      %795 = vrot.lane.b32.xlu0 %v612, 64
      %v796 = vpop.permute.xlu0 %795
      %797 = vrot.lane.b32.xlu0 %v615, 64
      %v798 = vpop.permute.xlu0 %797
      %799 = vrot.lane.b32.xlu0 %v618, 64
      %v800 = vpop.permute.xlu0 %799
      %801 = vrot.lane.b32.xlu0 %v701, 64
      %v802 = vpop.permute.xlu0 %801
      %803 = vrot.lane.b32.xlu0 %v784, 64
      %v804 = vpop.permute.xlu0 %803
      %vm805 = vcmask 64512
      %v807 = vsel %vm805, %v407, %v569
      %v809 = vsel %vm805, %v408, %v571
      %v811 = vsel %vm805, %v409, %v573
      %v813 = vsel %vm805, %v410, %v575
      %v815 = vsel %vm805, %v411, %v577
      %v817 = vsel %vm805, %v412, %v579
      %v819 = vsel %vm805, %v413, %v581
      %v821 = vsel %vm805, %v414, %v583
      %v823 = vsel %vm805, %v415, %v585
      %v825 = vsel %vm805, %v416, %v587
      %vm826 = vcmask 130048
      %v828 = vsel %vm826, %v807, %v620
      %v830 = vsel %vm826, %v809, %v622
      %v832 = vsel %vm826, %v811, %v624
      %v834 = vsel %vm826, %v813, %v626
      %v836 = vsel %vm826, %v815, %v628
      %v838 = vsel %vm826, %v817, %v630
      %v840 = vsel %vm826, %v819, %v632
      %v842 = vsel %vm826, %v821, %v634
      %v844 = vsel %vm826, %v823, %v636
      %v846 = vsel %vm826, %v825, %v638
      %vm847 = vcmask 195584
      %v849 = vsel %vm847, %v828, %v645
      %v851 = vsel %vm847, %v830, %v647
      %v853 = vsel %vm847, %v832, %v649
      %v855 = vsel %vm847, %v834, %v651
      %v857 = vsel %vm847, %v836, %v653
      %v859 = vsel %vm847, %v838, %v655
      %v861 = vsel %vm847, %v840, %v657
      %v863 = vsel %vm847, %v842, %v659
      %v865 = vsel %vm847, %v844, %v661
      %v867 = vsel %vm847, %v846, %v663
      %vm868 = vcmask 261120
      %v870 = vsel %vm868, %v849, %v680
      %v872 = vsel %vm868, %v851, %v682
      %v874 = vsel %vm868, %v853, %v684
      %v876 = vsel %vm868, %v855, %v686
      %v878 = vsel %vm868, %v857, %v688
      %v880 = vsel %vm868, %v859, %v690
      %v882 = vsel %vm868, %v861, %v692
      %v884 = vsel %vm868, %v863, %v694
      %v886 = vsel %vm868, %v865, %v696
      %v888 = vsel %vm868, %v867, %v698
      %vm889 = vcmask 326656
      %v891 = vsel %vm889, %v870, %v703
      %v893 = vsel %vm889, %v872, %v705
      %v895 = vsel %vm889, %v874, %v707
      %v897 = vsel %vm889, %v876, %v709
      %v899 = vsel %vm889, %v878, %v711
      %v901 = vsel %vm889, %v880, %v713
      %v903 = vsel %vm889, %v882, %v715
      %v905 = vsel %vm889, %v884, %v717
      %v907 = vsel %vm889, %v886, %v719
      %v909 = vsel %vm889, %v888, %v721
      %vm910 = vcmask 392192
      %v912 = vsel %vm910, %v891, %v728
      %v914 = vsel %vm910, %v893, %v730
      %v916 = vsel %vm910, %v895, %v732
      %v918 = vsel %vm910, %v897, %v734
      %v920 = vsel %vm910, %v899, %v736
      %v922 = vsel %vm910, %v901, %v738
      %v924 = vsel %vm910, %v903, %v740
      %v926 = vsel %vm910, %v905, %v742
      %v928 = vsel %vm910, %v907, %v744
      %v930 = vsel %vm910, %v909, %v746
      %vm931 = vcmask 457728
      %v933 = vsel %vm931, %v912, %v763
      %v935 = vsel %vm931, %v914, %v765
      %v937 = vsel %vm931, %v916, %v767
      %v939 = vsel %vm931, %v918, %v769
      %v941 = vsel %vm931, %v920, %v771
      %v943 = vsel %vm931, %v922, %v773
      %v945 = vsel %vm931, %v924, %v775
      %v947 = vsel %vm931, %v926, %v777
      %v949 = vsel %vm931, %v928, %v779
      %v951 = vsel %vm931, %v930, %v781
      %vm952 = vcmask 523264
      %v954 = vsel %vm952, %v933, %v786
      %v956 = vsel %vm952, %v935, %v788
      %v958 = vsel %vm952, %v937, %v790
      %v960 = vsel %vm952, %v939, %v792
      %v962 = vsel %vm952, %v941, %v794
      %v964 = vsel %vm952, %v943, %v796
      %v966 = vsel %vm952, %v945, %v798
      %v968 = vsel %vm952, %v947, %v800
      %v970 = vsel %vm952, %v949, %v802
      %v972 = vsel %vm952, %v951, %v804
      %v973 = vld [vmem:[%s2] sm:$0xf]
      %v974 = vld [vmem:[%s2 + $0x4] sm:$0xf]
      %v975 = vld [vmem:[%s2 + $0x8] sm:$0xf]
      %v976 = vld [vmem:[%s2 + $0xc] sm:$0xf]
      %v977 = vld [vmem:[%s2 + $0x10] sm:$0xf]
      %v978 = vld [vmem:[%s2 + $0x14] sm:$0xf]
      %v979 = vld [vmem:[%s2 + $0x18] sm:$0xf]
      %v980 = vld [vmem:[%s2 + $0x1c] sm:$0xf]
      %v981 = vld [vmem:[%s2 + $0x20] sm:$0xf]
      %v982 = vld [vmem:[%s3] sm:$0x1]
      %v984 = vlaneseq
      %v985 = vshrl.u32 %v984, 7
      %v986 = vsub.s32 0, %v985
      %v987 = vrot.slane %v982, %v986
      %v998 = vunpack.c.l.b16 %v973
      %v999 = vunpack.c.l.b16 %v974
      %v1000 = vunpack.c.l.b16 %v975
      %v1001 = vunpack.c.l.b16 %v976
      %v1002 = vunpack.c.l.b16 %v977
      %v1003 = vunpack.c.l.b16 %v978
      %v1004 = vunpack.c.l.b16 %v979
      %v1005 = vunpack.c.l.b16 %v980
      %v1006 = vunpack.c.l.b16 %v981
      %v1007 = vpack.c.b16 %v999, %v998
      %v1008 = vpack.c.b16 %v1001, %v1000
      %v1009 = vpack.c.b16 %v1003, %v1002
      %v1010 = vpack.c.b16 %v1005, %v1004
      %v1011 = vpack.c.b16 %v1006, %v1006
      %vm1016 = vcmask 588800
      %v1017 = vsel %vm1016, %v954, 0
      %v1019 = vsel %vm1016, %v956, 0
      %v1021 = vsel %vm1016, %v958, 0
      %v1023 = vsel %vm1016, %v960, 0
      %v1025 = vsel %vm1016, %v962, 0
      %v1027 = vsel %vm1016, %v964, 0
      %v1029 = vsel %vm1016, %v966, 0
      %v1031 = vsel %vm1016, %v968, 0
      %v1033 = vsel %vm1016, %v970, 0
      %v1035 = vsel %vm1016, %v972, 0
      %vm1037 = vcmask 1043456
      %v1039 = vsel %vm1037, %v1011, 0
      %1041 = vmatprep.subr.bf16.mxu0 0
      %1042 = vmatpush1.bf16.msra.mxu0 0
      %1043 = vmatprep.subr.bf16.mxu0 0
      %1044 = vmatpush1.bf16.msra.mxu0 0
      %1045 = vmatprep.subr.bf16.mxu0 0
      %1046 = vmatpush1.bf16.msra.mxu0 0
      %1047 = vmatprep.subr.bf16.mxu0 0
      %1048 = vmatpush1.bf16.msra.mxu0 %v1039
      %1049 = vmatprep.subr.bf16.mxu0 0
      %1050 = vmatpush1.bf16.msra.mxu0 %v1010
      %1051 = vmatprep.subr.bf16.mxu0 0
      %1052 = vmatpush1.bf16.msra.mxu0 %v1009
      %1053 = vmatprep.subr.bf16.mxu0 0
      %1054 = vmatpush1.bf16.msra.mxu0 %v1008
      %1055 = vmatprep.subr.bf16.mxu0 0
      %1056 = vmatpush1.bf16.msra.mxu0 %v1007
      %1057 = vmatprep.subr.bf16.mxu0 0
      %1058 = vmatpush2.bf16.msra.mxu0 0
      %1059 = vmatprep.subr.bf16.mxu0 0
      %1060 = vmatpush2.bf16.msra.mxu0 0
      %1061 = vmatprep.subr.bf16.mxu0 0
      %1062 = vmatpush2.bf16.msra.mxu0 0
      %1063 = vmatprep.subr.bf16.mxu0 0
      %1064 = vmatpush2.bf16.msra.mxu0 0
      %1065 = vmatprep.subr.bf16.mxu0 0
      %1066 = vmatpush2.bf16.msra.mxu0 0
      %1067 = vmatprep.subr.bf16.mxu0 0
      %1068 = vmatpush2.bf16.msra.mxu0 0
      %1069 = vmatprep.subr.bf16.mxu0 0
      %1070 = vmatpush2.bf16.msra.mxu0 0
      %1071 = vmatprep.subr.bf16.mxu0 0
      %1072 = vmatpush2.bf16.msra.mxu0 0
      %1073 = vmatprep.mubr.bf16.mxu0 0
      %1074 = vmatmul.mubr.bf16.gmra.mxu0 %v1017
      %v1075 = vpop.f32.mrf.mxu0
      %v1076 = vadd.f32 %v987, %v1075
      %v1077 = vpop.f32.mrf.mxu0
      %v1078 = vpop.f32.mrf.mxu0
      %v1079 = vadd.f32 %v987, %v1078
      %v1080 = vpop.f32.mrf.mxu0
      %1081 = vmatprep.mubr.bf16.mxu0 0
      %1082 = vmatmul.mubr.bf16.gmra.mxu0 %v1019
      %v1083 = vpop.f32.mrf.mxu0
      %v1084 = vadd.f32 %v987, %v1083
      %v1085 = vpop.f32.mrf.mxu0
      %v1086 = vpop.f32.mrf.mxu0
      %v1087 = vadd.f32 %v987, %v1086
      %v1088 = vpop.f32.mrf.mxu0
      %1089 = vmatprep.mubr.bf16.mxu0 0
      %1090 = vmatmul.mubr.bf16.gmra.mxu0 %v1021
      %v1091 = vpop.f32.mrf.mxu0
      %v1092 = vadd.f32 %v987, %v1091
      %v1093 = vpop.f32.mrf.mxu0
      %v1094 = vpop.f32.mrf.mxu0
      %v1095 = vadd.f32 %v987, %v1094
      %v1096 = vpop.f32.mrf.mxu0
      %1097 = vmatprep.mubr.bf16.mxu0 0
      %1098 = vmatmul.mubr.bf16.gmra.mxu0 %v1023
      %v1099 = vpop.f32.mrf.mxu0
      %v1100 = vadd.f32 %v987, %v1099
      %v1101 = vpop.f32.mrf.mxu0
      %v1102 = vpop.f32.mrf.mxu0
      %v1103 = vadd.f32 %v987, %v1102
      %v1104 = vpop.f32.mrf.mxu0
      %1105 = vmatprep.mubr.bf16.mxu0 0
      %1106 = vmatmul.mubr.bf16.gmra.mxu0 %v1025
      %v1107 = vpop.f32.mrf.mxu0
      %v1108 = vadd.f32 %v987, %v1107
      %v1109 = vpop.f32.mrf.mxu0
      %v1110 = vpop.f32.mrf.mxu0
      %v1111 = vadd.f32 %v987, %v1110
      %v1112 = vpop.f32.mrf.mxu0
      %1113 = vmatprep.mubr.bf16.mxu0 0
      %1114 = vmatmul.mubr.bf16.gmra.mxu0 %v1027
      %v1115 = vpop.f32.mrf.mxu0
      %v1116 = vadd.f32 %v987, %v1115
      %v1117 = vpop.f32.mrf.mxu0
      %v1118 = vpop.f32.mrf.mxu0
      %v1119 = vadd.f32 %v987, %v1118
      %v1120 = vpop.f32.mrf.mxu0
      %1121 = vmatprep.mubr.bf16.mxu0 0
      %1122 = vmatmul.mubr.bf16.gmra.mxu0 %v1029
      %v1123 = vpop.f32.mrf.mxu0
      %v1124 = vadd.f32 %v987, %v1123
      %v1125 = vpop.f32.mrf.mxu0
      %v1126 = vpop.f32.mrf.mxu0
      %v1127 = vadd.f32 %v987, %v1126
      %v1128 = vpop.f32.mrf.mxu0
      %1129 = vmatprep.mubr.bf16.mxu0 0
      %1130 = vmatmul.mubr.bf16.gmra.mxu0 %v1031
      %v1131 = vpop.f32.mrf.mxu0
      %v1132 = vadd.f32 %v987, %v1131
      %v1133 = vpop.f32.mrf.mxu0
      %v1134 = vpop.f32.mrf.mxu0
      %v1135 = vadd.f32 %v987, %v1134
      %v1136 = vpop.f32.mrf.mxu0
      %1137 = vmatprep.mubr.bf16.mxu0 0
      %1138 = vmatmul.mubr.bf16.gmra.mxu0 %v1033
      %v1139 = vpop.f32.mrf.mxu0
      %v1140 = vadd.f32 %v987, %v1139
      %v1141 = vpop.f32.mrf.mxu0
      %v1142 = vpop.f32.mrf.mxu0
      %v1143 = vadd.f32 %v987, %v1142
      %v1144 = vpop.f32.mrf.mxu0
      %1145 = vmatprep.mubr.bf16.mxu0 0
      %1146 = vmatmul.mubr.bf16.gmra.mxu0 %v1035
      %v1147 = vpop.f32.mrf.mxu0
      %v1148 = vadd.f32 %v987, %v1147
      %v1149 = vpop.f32.mrf.mxu0
      %v1150 = vpop.f32.mrf.mxu0
      %v1151 = vadd.f32 %v987, %v1150
      %v1152 = vpop.f32.mrf.mxu0
      %1153 = vdwg.mxu0
      %v1154 = vmax.f32 %v1076, 0.0
      %v1155 = vmax.f32 %v1079, 0.0
      %v1156 = vmax.f32 %v1084, 0.0
      %v1157 = vmax.f32 %v1087, 0.0
      %v1158 = vmax.f32 %v1092, 0.0
      %v1159 = vmax.f32 %v1095, 0.0
      %v1160 = vmax.f32 %v1100, 0.0
      %v1161 = vmax.f32 %v1103, 0.0
      %v1162 = vmax.f32 %v1108, 0.0
      %v1163 = vmax.f32 %v1111, 0.0
      %v1164 = vmax.f32 %v1116, 0.0
      %v1165 = vmax.f32 %v1119, 0.0
      %v1166 = vmax.f32 %v1124, 0.0
      %v1167 = vmax.f32 %v1127, 0.0
      %v1168 = vmax.f32 %v1132, 0.0
      %v1169 = vmax.f32 %v1135, 0.0
      %v1170 = vmax.f32 %v1140, 0.0
      %v1171 = vmax.f32 %v1143, 0.0
      %v1172 = vmax.f32 %v1148, 0.0
      %v1173 = vmax.f32 %v1151, 0.0
      %s1174 = smul.u32 %s22, 8
      %s1175 = ssub.s32 %s1174, 1
      %v1176 = vstv %s1175
      %v1177 = vadd.s32 %v1176, 1
      %v1178 = vadd.s32 %v1176, 2
      %v1179 = vadd.s32 %v1176, 3
      %v1180 = vadd.s32 %v1176, 4
      %v1181 = vadd.s32 %v1176, 5
      %v1182 = vadd.s32 %v1176, 6
      %v1183 = vadd.s32 %v1176, 7
      %v1184 = vadd.s32 %v1176, 8
      %v1185 = vadd.s32 %v1176, 9
      %vm1186 = vcmp.ge.s32.totalorder %v1176, 0
      %vm1187 = vcmp.ge.s32.totalorder %v1177, 0
      %vm1188 = vcmp.ge.s32.totalorder %v1178, 0
      %vm1189 = vcmp.ge.s32.totalorder %v1179, 0
      %vm1190 = vcmp.ge.s32.totalorder %v1180, 0
      %vm1191 = vcmp.ge.s32.totalorder %v1181, 0
      %vm1192 = vcmp.ge.s32.totalorder %v1182, 0
      %vm1193 = vcmp.ge.s32.totalorder %v1183, 0
      %vm1194 = vcmp.ge.s32.totalorder %v1184, 0
      %vm1195 = vcmp.ge.s32.totalorder %v1185, 0
      %vm1196 = vcmp.lt.s32.totalorder %v1176, 16
      %vm1197 = vcmp.lt.s32.totalorder %v1177, 16
      %vm1198 = vcmp.lt.s32.totalorder %v1178, 16
      %vm1199 = vcmp.lt.s32.totalorder %v1179, 16
      %vm1200 = vcmp.lt.s32.totalorder %v1180, 16
      %vm1201 = vcmp.lt.s32.totalorder %v1181, 16
      %vm1202 = vcmp.lt.s32.totalorder %v1182, 16
      %vm1203 = vcmp.lt.s32.totalorder %v1183, 16
      %vm1204 = vcmp.lt.s32.totalorder %v1184, 16
      %vm1205 = vcmp.lt.s32.totalorder %v1185, 16
      %vm1206 = vmand %vm1186, %vm1196
      %vm1207 = vmand %vm1187, %vm1197
      %vm1208 = vmand %vm1188, %vm1198
      %vm1209 = vmand %vm1189, %vm1199
      %vm1210 = vmand %vm1190, %vm1200
      %vm1211 = vmand %vm1191, %vm1201
      %vm1212 = vmand %vm1192, %vm1202
      %vm1213 = vmand %vm1193, %vm1203
      %vm1214 = vmand %vm1194, %vm1204
      %vm1215 = vmand %vm1195, %vm1205
      %v1216 = vsel %vm1206, 1, 0
      %v1217 = vsel %vm1207, 1, 0
      %v1218 = vsel %vm1208, 1, 0
      %v1219 = vsel %vm1209, 1, 0
      %v1220 = vsel %vm1210, 1, 0
      %v1221 = vsel %vm1211, 1, 0
      %v1222 = vsel %vm1212, 1, 0
      %v1223 = vsel %vm1213, 1, 0
      %v1224 = vsel %vm1214, 1, 0
      %v1225 = vsel %vm1215, 1, 0
      %vm1226 = vcmp.eq.s32.totalorder %v1216, 1
      %vm1227 = vcmp.eq.s32.totalorder %v1217, 1
      %vm1228 = vcmp.eq.s32.totalorder %v1218, 1
      %vm1229 = vcmp.eq.s32.totalorder %v1219, 1
      %vm1230 = vcmp.eq.s32.totalorder %v1220, 1
      %vm1231 = vcmp.eq.s32.totalorder %v1221, 1
      %vm1232 = vcmp.eq.s32.totalorder %v1222, 1
      %vm1233 = vcmp.eq.s32.totalorder %v1223, 1
      %vm1234 = vcmp.eq.s32.totalorder %v1224, 1
      %vm1235 = vcmp.eq.s32.totalorder %v1225, 1
      %v1236 = vsel %vm1226, %v1154, 0.0
      %v1237 = vsel %vm1226, %v1155, 0.0
      %v1238 = vsel %vm1227, %v1156, 0.0
      %v1239 = vsel %vm1227, %v1157, 0.0
      %v1240 = vsel %vm1228, %v1158, 0.0
      %v1241 = vsel %vm1228, %v1159, 0.0
      %v1242 = vsel %vm1229, %v1160, 0.0
      %v1243 = vsel %vm1229, %v1161, 0.0
      %v1244 = vsel %vm1230, %v1162, 0.0
      %v1245 = vsel %vm1230, %v1163, 0.0
      %v1246 = vsel %vm1231, %v1164, 0.0
      %v1247 = vsel %vm1231, %v1165, 0.0
      %v1248 = vsel %vm1232, %v1166, 0.0
      %v1249 = vsel %vm1232, %v1167, 0.0
      %v1250 = vsel %vm1233, %v1168, 0.0
      %v1251 = vsel %vm1233, %v1169, 0.0
      %v1252 = vsel %vm1234, %v1170, 0.0
      %v1253 = vsel %vm1234, %v1171, 0.0
      %v1254 = vsel %vm1235, %v1172, 0.0
      %v1255 = vsel %vm1235, %v1173, 0.0
      %v1256 = vpack.c.bf16 %v1237, %v1236
      %v1257 = vpack.c.bf16 %v1239, %v1238
      %v1258 = vpack.c.bf16 %v1241, %v1240
      %v1259 = vpack.c.bf16 %v1243, %v1242
      %v1260 = vpack.c.bf16 %v1245, %v1244
      %v1261 = vpack.c.bf16 %v1247, %v1246
      %v1262 = vpack.c.bf16 %v1249, %v1248
      %v1263 = vpack.c.bf16 %v1251, %v1250
      %v1264 = vpack.c.bf16 %v1253, %v1252
      %v1265 = vpack.c.bf16 %v1255, %v1254
      %v1267 = vshrl.u32 %v1256, 16
      %v1269 = vrot.slane %v1267, 7
      %v1270 = vshll.u32 %v1256, 16
      %v1272 = vor.u32 %v1269, %v1270
      %v1274 = vshrl.u32 %v1257, 16
      %v1276 = vrot.slane %v1274, 7
      %v1277 = vshll.u32 %v1257, 16
      %v1279 = vor.u32 %v1276, %v1277
      %v1281 = vshrl.u32 %v1258, 16
      %v1283 = vrot.slane %v1281, 7
      %v1284 = vshll.u32 %v1258, 16
      %v1286 = vor.u32 %v1283, %v1284
      %v1288 = vshrl.u32 %v1259, 16
      %v1290 = vrot.slane %v1288, 7
      %v1291 = vshll.u32 %v1259, 16
      %v1293 = vor.u32 %v1290, %v1291
      %v1295 = vshrl.u32 %v1260, 16
      %v1297 = vrot.slane %v1295, 7
      %v1298 = vshll.u32 %v1260, 16
      %v1300 = vor.u32 %v1297, %v1298
      %v1302 = vshrl.u32 %v1261, 16
      %v1304 = vrot.slane %v1302, 7
      %v1305 = vshll.u32 %v1261, 16
      %v1307 = vor.u32 %v1304, %v1305
      %v1309 = vshrl.u32 %v1262, 16
      %v1311 = vrot.slane %v1309, 7
      %v1312 = vshll.u32 %v1262, 16
      %v1314 = vor.u32 %v1311, %v1312
      %v1316 = vshrl.u32 %v1263, 16
      %v1318 = vrot.slane %v1316, 7
      %v1319 = vshll.u32 %v1263, 16
      %v1321 = vor.u32 %v1318, %v1319
      %v1323 = vshrl.u32 %v1264, 16
      %v1325 = vrot.slane %v1323, 7
      %v1326 = vshll.u32 %v1264, 16
      %v1328 = vor.u32 %v1325, %v1326
      %v1330 = vshrl.u32 %v1265, 16
      %v1332 = vrot.slane %v1330, 7
      %v1333 = vshll.u32 %v1265, 16
      %v1335 = vor.u32 %v1332, %v1333
      %vm1356 = vcmask 1040384
      %vm1357 = vsmask.f32 256
      %vm1358 = vmand %vm1356, %vm1357
      %v1359 = vsel %vm1358, 0, %v1272
      %v1360 = vsel %vm1358, 0, %v1279
      %v1361 = vsel %vm1358, 0, %v1286
      %v1362 = vsel %vm1358, 0, %v1293
      %v1363 = vsel %vm1358, 0, %v1300
      %v1364 = vsel %vm1358, 0, %v1307
      %v1365 = vsel %vm1358, 0, %v1314
      %v1366 = vsel %vm1358, 0, %v1321
      %v1367 = vsel %vm1358, 0, %v1328
      %v1368 = vsel %vm1358, 0, %v1335
      %v1369 = vsel %vm1358, %v1269, 0
      %v1370 = vsel %vm1358, %v1276, 0
      %v1371 = vsel %vm1358, %v1283, 0
      %v1372 = vsel %vm1358, %v1290, 0
      %v1373 = vsel %vm1358, %v1297, 0
      %v1374 = vsel %vm1358, %v1304, 0
      %v1375 = vsel %vm1358, %v1311, 0
      %v1376 = vsel %vm1358, %v1318, 0
      %v1377 = vsel %vm1358, %v1325, 0
      %v1378 = vsel %vm1358, %v1332, 0
      %v1380 = vshrl.u32 %v1359, 16
      %v1382 = vshll.u32 %v1359, 16
      %v1384 = vrot.slane %v1382, 1
      %v1385 = vor.u32 %v1380, %v1384
      %v1387 = vshll.u32 %v1369, 16
      %v1389 = vrot.slane %v1387, 1
      %v1390 = vsel %vm447, %v1385, %v1389
      %v1392 = vshrl.u32 %v1360, 16
      %v1394 = vshll.u32 %v1360, 16
      %v1396 = vrot.slane %v1394, 1
      %v1397 = vor.u32 %v1392, %v1396
      %v1399 = vshll.u32 %v1370, 16
      %v1401 = vrot.slane %v1399, 1
      %v1402 = vsel %vm447, %v1397, %v1401
      %v1404 = vshrl.u32 %v1361, 16
      %v1406 = vshll.u32 %v1361, 16
      %v1408 = vrot.slane %v1406, 1
      %v1409 = vor.u32 %v1404, %v1408
      %v1411 = vshll.u32 %v1371, 16
      %v1413 = vrot.slane %v1411, 1
      %v1414 = vsel %vm447, %v1409, %v1413
      %v1416 = vshrl.u32 %v1362, 16
      %v1418 = vshll.u32 %v1362, 16
      %v1420 = vrot.slane %v1418, 1
      %v1421 = vor.u32 %v1416, %v1420
      %v1423 = vshll.u32 %v1372, 16
      %v1425 = vrot.slane %v1423, 1
      %v1426 = vsel %vm447, %v1421, %v1425
      %v1428 = vshrl.u32 %v1363, 16
      %v1430 = vshll.u32 %v1363, 16
      %v1432 = vrot.slane %v1430, 1
      %v1433 = vor.u32 %v1428, %v1432
      %v1435 = vshll.u32 %v1373, 16
      %v1437 = vrot.slane %v1435, 1
      %v1438 = vsel %vm447, %v1433, %v1437
      %v1440 = vshrl.u32 %v1364, 16
      %v1442 = vshll.u32 %v1364, 16
      %v1444 = vrot.slane %v1442, 1
      %v1445 = vor.u32 %v1440, %v1444
      %v1447 = vshll.u32 %v1374, 16
      %v1449 = vrot.slane %v1447, 1
      %v1450 = vsel %vm447, %v1445, %v1449
      %v1452 = vshrl.u32 %v1365, 16
      %v1454 = vshll.u32 %v1365, 16
      %v1456 = vrot.slane %v1454, 1
      %v1457 = vor.u32 %v1452, %v1456
      %v1459 = vshll.u32 %v1375, 16
      %v1461 = vrot.slane %v1459, 1
      %v1462 = vsel %vm447, %v1457, %v1461
      %v1464 = vshrl.u32 %v1366, 16
      %v1466 = vshll.u32 %v1366, 16
      %v1468 = vrot.slane %v1466, 1
      %v1469 = vor.u32 %v1464, %v1468
      %v1471 = vshll.u32 %v1376, 16
      %v1473 = vrot.slane %v1471, 1
      %v1474 = vsel %vm447, %v1469, %v1473
      %1475 = vrot.lane.b32.xlu0 %v1390, 64
      %v1476 = vpop.permute.xlu0 %1475
      %1477 = vrot.lane.b32.xlu0 %v1402, 64
      %v1478 = vpop.permute.xlu0 %1477
      %1479 = vrot.lane.b32.xlu0 %v1414, 64
      %v1480 = vpop.permute.xlu0 %1479
      %1481 = vrot.lane.b32.xlu0 %v1426, 64
      %v1482 = vpop.permute.xlu0 %1481
      %1483 = vrot.lane.b32.xlu0 %v1438, 64
      %v1484 = vpop.permute.xlu0 %1483
      %1485 = vrot.lane.b32.xlu0 %v1450, 64
      %v1486 = vpop.permute.xlu0 %1485
      %1487 = vrot.lane.b32.xlu0 %v1462, 64
      %v1488 = vpop.permute.xlu0 %1487
      %1489 = vrot.lane.b32.xlu0 %v1474, 64
      %v1490 = vpop.permute.xlu0 %1489
      %v1507 = vrot.slane %v1359, 1
      %v1508 = vrot.slane %v1369, 1
      %v1509 = vsel %vm588, %v1507, %v1508
      %v1510 = vrot.slane %v1360, 1
      %v1511 = vrot.slane %v1370, 1
      %v1512 = vsel %vm588, %v1510, %v1511
      %v1513 = vrot.slane %v1361, 1
      %v1514 = vrot.slane %v1371, 1
      %v1515 = vsel %vm588, %v1513, %v1514
      %v1516 = vrot.slane %v1362, 1
      %v1517 = vrot.slane %v1372, 1
      %v1518 = vsel %vm588, %v1516, %v1517
      %v1519 = vrot.slane %v1363, 1
      %v1520 = vrot.slane %v1373, 1
      %v1521 = vsel %vm588, %v1519, %v1520
      %v1522 = vrot.slane %v1364, 1
      %v1523 = vrot.slane %v1374, 1
      %v1524 = vsel %vm588, %v1522, %v1523
      %v1525 = vrot.slane %v1365, 1
      %v1526 = vrot.slane %v1375, 1
      %v1527 = vsel %vm588, %v1525, %v1526
      %v1528 = vrot.slane %v1366, 1
      %v1529 = vrot.slane %v1376, 1
      %v1530 = vsel %vm588, %v1528, %v1529
      %1532 = vrot.lane.b32.xlu0 %v1360, 64
      %v1533 = vpop.permute.xlu0 %1532
      %1534 = vrot.lane.b32.xlu0 %v1361, 64
      %v1535 = vpop.permute.xlu0 %1534
      %1536 = vrot.lane.b32.xlu0 %v1362, 64
      %v1537 = vpop.permute.xlu0 %1536
      %1538 = vrot.lane.b32.xlu0 %v1363, 64
      %v1539 = vpop.permute.xlu0 %1538
      %1540 = vrot.lane.b32.xlu0 %v1364, 64
      %v1541 = vpop.permute.xlu0 %1540
      %1542 = vrot.lane.b32.xlu0 %v1365, 64
      %v1543 = vpop.permute.xlu0 %1542
      %1544 = vrot.lane.b32.xlu0 %v1366, 64
      %v1545 = vpop.permute.xlu0 %1544
      %1546 = vrot.lane.b32.xlu0 %v1367, 64
      %v1547 = vpop.permute.xlu0 %1546
      %v1549 = vshrl.u32 %v1367, 16
      %v1551 = vshll.u32 %v1367, 16
      %v1553 = vrot.slane %v1551, 1
      %v1554 = vor.u32 %v1549, %v1553
      %v1556 = vshll.u32 %v1377, 16
      %v1558 = vrot.slane %v1556, 1
      %v1559 = vsel %vm447, %v1554, %v1558
      %v1561 = vrot.slane %v1367, 1
      %v1562 = vrot.slane %v1377, 1
      %v1563 = vsel %vm588, %v1561, %v1562
      %1564 = vrot.lane.b32.xlu0 %v1512, 64
      %v1565 = vpop.permute.xlu0 %1564
      %1566 = vrot.lane.b32.xlu0 %v1515, 64
      %v1567 = vpop.permute.xlu0 %1566
      %1568 = vrot.lane.b32.xlu0 %v1518, 64
      %v1569 = vpop.permute.xlu0 %1568
      %1570 = vrot.lane.b32.xlu0 %v1521, 64
      %v1571 = vpop.permute.xlu0 %1570
      %1572 = vrot.lane.b32.xlu0 %v1524, 64
      %v1573 = vpop.permute.xlu0 %1572
      %1574 = vrot.lane.b32.xlu0 %v1527, 64
      %v1575 = vpop.permute.xlu0 %1574
      %1576 = vrot.lane.b32.xlu0 %v1530, 64
      %v1577 = vpop.permute.xlu0 %1576
      %1578 = vrot.lane.b32.xlu0 %v1563, 64
      %v1579 = vpop.permute.xlu0 %1578
      %v1581 = vshrl.u32 %v1368, 16
      %v1583 = vshll.u32 %v1368, 16
      %v1585 = vrot.slane %v1583, 1
      %v1586 = vor.u32 %v1581, %v1585
      %v1588 = vshll.u32 %v1378, 16
      %v1590 = vrot.slane %v1588, 1
      %v1591 = vsel %vm447, %v1586, %v1590
      %1592 = vrot.lane.b32.xlu0 %v1559, 64
      %v1593 = vpop.permute.xlu0 %1592
      %1594 = vrot.lane.b32.xlu0 %v1591, 64
      %v1595 = vpop.permute.xlu0 %1594
      %v1598 = vrot.slane %v1368, 1
      %v1599 = vrot.slane %v1378, 1
      %v1600 = vsel %vm588, %v1598, %v1599
      %v1602 = vsel %vm952, %v1359, %v1476
      %v1605 = vsel %vm952, %v1360, %v1478
      %v1608 = vsel %vm952, %v1361, %v1480
      %v1611 = vsel %vm952, %v1362, %v1482
      %v1614 = vsel %vm952, %v1363, %v1484
      %v1617 = vsel %vm952, %v1364, %v1486
      %v1620 = vsel %vm952, %v1365, %v1488
      %v1623 = vsel %vm952, %v1366, %v1490
      %v1627 = vsel %vm952, %v1509, %v1533
      %v1631 = vsel %vm952, %v1512, %v1535
      %v1635 = vsel %vm952, %v1515, %v1537
      %v1639 = vsel %vm952, %v1518, %v1539
      %v1643 = vsel %vm952, %v1521, %v1541
      %v1647 = vsel %vm952, %v1524, %v1543
      %v1651 = vsel %vm952, %v1527, %v1545
      %v1655 = vsel %vm952, %v1530, %v1547
      %v1659 = vsel %vm952, %v1402, %v1565
      %v1663 = vsel %vm952, %v1414, %v1567
      %v1667 = vsel %vm952, %v1426, %v1569
      %v1671 = vsel %vm952, %v1438, %v1571
      %v1675 = vsel %vm952, %v1450, %v1573
      %v1679 = vsel %vm952, %v1462, %v1575
      %v1683 = vsel %vm952, %v1474, %v1577
      %v1687 = vsel %vm952, %v1559, %v1579
      %v1690 = vsel %vm952, %v1367, %v1593
      %v1693 = vsel %vm952, %v1368, %v1595
      %v1695 = vld [vmem:[%s4] sm:$0xf]
      %v1696 = vld [vmem:[%s4 + $0x4] sm:$0xf]
      %v1697 = vld [vmem:[%s4 + $0x8] sm:$0xf]
      %v1698 = vld [vmem:[%s4 + $0xc] sm:$0xf]
      %v1699 = vld [vmem:[%s4 + $0x10] sm:$0xf]
      %v1700 = vld [vmem:[%s4 + $0x14] sm:$0xf]
      %v1701 = vld [vmem:[%s4 + $0x18] sm:$0xf]
      %v1702 = vld [vmem:[%s4 + $0x1c] sm:$0xf]
      %v1703 = vld [vmem:[%s4 + $0x20] sm:$0xf]
      %v1704 = vld [vmem:[%s4 + $0x24] sm:$0xf]
      %v1705 = vld [vmem:[%s4 + $0x28] sm:$0xf]
      %v1706 = vld [vmem:[%s4 + $0x2c] sm:$0xf]
      %v1707 = vld [vmem:[%s4 + $0x30] sm:$0xf]
      %v1708 = vld [vmem:[%s4 + $0x34] sm:$0xf]
      %v1709 = vld [vmem:[%s4 + $0x38] sm:$0xf]
      %v1710 = vld [vmem:[%s4 + $0x3c] sm:$0xf]
      %v1711 = vld [vmem:[%s4 + $0x40] sm:$0xf]
      %v1712 = vld [vmem:[%s4 + $0x44] sm:$0xf]
      %v1713 = vld [vmem:[%s4 + $0x48] sm:$0xf]
      %v1714 = vld [vmem:[%s4 + $0x4c] sm:$0xf]
      %v1715 = vld [vmem:[%s4 + $0x50] sm:$0xf]
      %v1716 = vld [vmem:[%s4 + $0x54] sm:$0xf]
      %v1717 = vld [vmem:[%s4 + $0x58] sm:$0xf]
      %v1718 = vld [vmem:[%s4 + $0x5c] sm:$0xf]
      %v1719 = vld [vmem:[%s4 + $0x60] sm:$0xf]
      %v1720 = vld [vmem:[%s4 + $0x64] sm:$0xf]
      %v1721 = vld [vmem:[%s4 + $0x68] sm:$0xf]
      %v1722 = vld [vmem:[%s4 + $0x6c] sm:$0xf]
      %v1723 = vld [vmem:[%s4 + $0x70] sm:$0xf]
      %v1724 = vld [vmem:[%s4 + $0x74] sm:$0xf]
      %v1725 = vld [vmem:[%s4 + $0x78] sm:$0xf]
      %v1726 = vld [vmem:[%s4 + $0x7c] sm:$0xf]
      %v1727 = vld [vmem:[%s4 + $0x80] sm:$0xf]
      %v1728 = vld [vmem:[%s4 + $0x84] sm:$0xf]
      %v1729 = vld [vmem:[%s4 + $0x88] sm:$0xf]
      %v1730 = vld [vmem:[%s4 + $0x8c] sm:$0xf]
      %v1731 = vld [vmem:[%s4 + $0x90] sm:$0xf]
      %v1732 = vld [vmem:[%s4 + $0x94] sm:$0xf]
      %v1733 = vld [vmem:[%s4 + $0x98] sm:$0xf]
      %v1734 = vld [vmem:[%s4 + $0x9c] sm:$0xf]
      %v1735 = vld [vmem:[%s4 + $0xa0] sm:$0xf]
      %v1736 = vld [vmem:[%s4 + $0xa4] sm:$0xf]
      %v1737 = vld [vmem:[%s4 + $0xa8] sm:$0xf]
      %v1738 = vld [vmem:[%s4 + $0xac] sm:$0xf]
      %v1739 = vld [vmem:[%s4 + $0xb0] sm:$0xf]
      %v1740 = vld [vmem:[%s4 + $0xb4] sm:$0xf]
      %v1741 = vld [vmem:[%s4 + $0xb8] sm:$0xf]
      %v1742 = vld [vmem:[%s4 + $0xbc] sm:$0xf]
      %v1743 = vld [vmem:[%s4 + $0xc0] sm:$0xf]
      %v1744 = vld [vmem:[%s4 + $0xc4] sm:$0xf]
      %v1745 = vld [vmem:[%s4 + $0xc8] sm:$0xf]
      %v1746 = vld [vmem:[%s4 + $0xcc] sm:$0xf]
      %v1747 = vld [vmem:[%s4 + $0xd0] sm:$0xf]
      %v1748 = vld [vmem:[%s4 + $0xd4] sm:$0xf]
      %v1749 = vld [vmem:[%s4 + $0xd8] sm:$0xf]
      %v1750 = vld [vmem:[%s4 + $0xdc] sm:$0xf]
      %v1751 = vld [vmem:[%s4 + $0xe0] sm:$0xf]
      %v1752 = vld [vmem:[%s4 + $0xe4] sm:$0xf]
      %v1753 = vld [vmem:[%s4 + $0xe8] sm:$0xf]
      %v1754 = vld [vmem:[%s4 + $0xec] sm:$0xf]
      %v1755 = vld [vmem:[%s4 + $0xf0] sm:$0xf]
      %v1756 = vld [vmem:[%s4 + $0xf4] sm:$0xf]
      %v1757 = vld [vmem:[%s4 + $0xf8] sm:$0xf]
      %v1758 = vld [vmem:[%s4 + $0xfc] sm:$0xf]
      %v1759 = vld [vmem:[%s4 + $0x100] sm:$0xf]
      %v1760 = vld [vmem:[%s4 + $0x104] sm:$0xf]
      %v1761 = vld [vmem:[%s4 + $0x108] sm:$0xf]
      %v1762 = vld [vmem:[%s4 + $0x10c] sm:$0xf]
      %v1763 = vld [vmem:[%s4 + $0x110] sm:$0xf]
      %v1764 = vld [vmem:[%s4 + $0x114] sm:$0xf]
      %v1765 = vld [vmem:[%s4 + $0x118] sm:$0xf]
      %v1766 = vld [vmem:[%s4 + $0x11c] sm:$0xf]
      %v1767 = vld [vmem:[%s5] sm:$0x1]
      %v1769 = vlaneseq
      %v1770 = vshrl.u32 %v1769, 7
      %v1771 = vsub.s32 0, %v1770
      %v1772 = vrot.slane %v1767, %v1771
      %v1846 = vunpack.c.l.b16 %v1695
      %v1847 = vunpack.c.l.b16 %v1696
      %v1848 = vunpack.c.l.b16 %v1697
      %v1849 = vunpack.c.l.b16 %v1698
      %v1850 = vunpack.c.l.b16 %v1699
      %v1851 = vunpack.c.l.b16 %v1700
      %v1852 = vunpack.c.l.b16 %v1701
      %v1853 = vunpack.c.l.b16 %v1702
      %v1854 = vunpack.c.l.b16 %v1703
      %v1855 = vunpack.c.l.b16 %v1704
      %v1856 = vunpack.c.l.b16 %v1705
      %v1857 = vunpack.c.l.b16 %v1706
      %v1858 = vunpack.c.l.b16 %v1707
      %v1859 = vunpack.c.l.b16 %v1708
      %v1860 = vunpack.c.l.b16 %v1709
      %v1861 = vunpack.c.l.b16 %v1710
      %v1862 = vunpack.c.l.b16 %v1711
      %v1863 = vunpack.c.l.b16 %v1712
      %v1864 = vunpack.c.l.b16 %v1713
      %v1865 = vunpack.c.l.b16 %v1714
      %v1866 = vunpack.c.l.b16 %v1715
      %v1867 = vunpack.c.l.b16 %v1716
      %v1868 = vunpack.c.l.b16 %v1717
      %v1869 = vunpack.c.l.b16 %v1718
      %v1870 = vunpack.c.l.b16 %v1719
      %v1871 = vunpack.c.l.b16 %v1720
      %v1872 = vunpack.c.l.b16 %v1721
      %v1873 = vunpack.c.l.b16 %v1722
      %v1874 = vunpack.c.l.b16 %v1723
      %v1875 = vunpack.c.l.b16 %v1724
      %v1876 = vunpack.c.l.b16 %v1725
      %v1877 = vunpack.c.l.b16 %v1726
      %v1878 = vunpack.c.l.b16 %v1727
      %v1879 = vunpack.c.l.b16 %v1728
      %v1880 = vunpack.c.l.b16 %v1729
      %v1881 = vunpack.c.l.b16 %v1730
      %v1882 = vunpack.c.l.b16 %v1731
      %v1883 = vunpack.c.l.b16 %v1732
      %v1884 = vunpack.c.l.b16 %v1733
      %v1885 = vunpack.c.l.b16 %v1734
      %v1886 = vunpack.c.l.b16 %v1735
      %v1887 = vunpack.c.l.b16 %v1736
      %v1888 = vunpack.c.l.b16 %v1737
      %v1889 = vunpack.c.l.b16 %v1738
      %v1890 = vunpack.c.l.b16 %v1739
      %v1891 = vunpack.c.l.b16 %v1740
      %v1892 = vunpack.c.l.b16 %v1741
      %v1893 = vunpack.c.l.b16 %v1742
      %v1894 = vunpack.c.l.b16 %v1743
      %v1895 = vunpack.c.l.b16 %v1744
      %v1896 = vunpack.c.l.b16 %v1745
      %v1897 = vunpack.c.l.b16 %v1746
      %v1898 = vunpack.c.l.b16 %v1747
      %v1899 = vunpack.c.l.b16 %v1748
      %v1900 = vunpack.c.l.b16 %v1749
      %v1901 = vunpack.c.l.b16 %v1750
      %v1902 = vunpack.c.l.b16 %v1751
      %v1903 = vunpack.c.l.b16 %v1752
      %v1904 = vunpack.c.l.b16 %v1753
      %v1905 = vunpack.c.l.b16 %v1754
      %v1906 = vunpack.c.l.b16 %v1755
      %v1907 = vunpack.c.l.b16 %v1756
      %v1908 = vunpack.c.l.b16 %v1757
      %v1909 = vunpack.c.l.b16 %v1758
      %v1910 = vunpack.c.l.b16 %v1759
      %v1911 = vunpack.c.l.b16 %v1760
      %v1912 = vunpack.c.l.b16 %v1761
      %v1913 = vunpack.c.l.b16 %v1762
      %v1914 = vunpack.c.l.b16 %v1763
      %v1915 = vunpack.c.l.b16 %v1764
      %v1916 = vunpack.c.l.b16 %v1765
      %v1917 = vunpack.c.l.b16 %v1766
      %v1918 = vpack.c.b16 %v1847, %v1846
      %v1919 = vpack.c.b16 %v1849, %v1848
      %v1920 = vpack.c.b16 %v1851, %v1850
      %v1921 = vpack.c.b16 %v1853, %v1852
      %v1922 = vpack.c.b16 %v1855, %v1854
      %v1923 = vpack.c.b16 %v1857, %v1856
      %v1924 = vpack.c.b16 %v1859, %v1858
      %v1925 = vpack.c.b16 %v1861, %v1860
      %v1926 = vpack.c.b16 %v1863, %v1862
      %v1927 = vpack.c.b16 %v1865, %v1864
      %v1928 = vpack.c.b16 %v1867, %v1866
      %v1929 = vpack.c.b16 %v1869, %v1868
      %v1930 = vpack.c.b16 %v1871, %v1870
      %v1931 = vpack.c.b16 %v1873, %v1872
      %v1932 = vpack.c.b16 %v1875, %v1874
      %v1933 = vpack.c.b16 %v1877, %v1876
      %v1934 = vpack.c.b16 %v1879, %v1878
      %v1935 = vpack.c.b16 %v1881, %v1880
      %v1936 = vpack.c.b16 %v1883, %v1882
      %v1937 = vpack.c.b16 %v1885, %v1884
      %v1938 = vpack.c.b16 %v1887, %v1886
      %v1939 = vpack.c.b16 %v1889, %v1888
      %v1940 = vpack.c.b16 %v1891, %v1890
      %v1941 = vpack.c.b16 %v1893, %v1892
      %v1942 = vpack.c.b16 %v1895, %v1894
      %v1943 = vpack.c.b16 %v1897, %v1896
      %v1944 = vpack.c.b16 %v1899, %v1898
      %v1945 = vpack.c.b16 %v1901, %v1900
      %v1946 = vpack.c.b16 %v1903, %v1902
      %v1947 = vpack.c.b16 %v1905, %v1904
      %v1948 = vpack.c.b16 %v1907, %v1906
      %v1949 = vpack.c.b16 %v1909, %v1908
      %v1950 = vpack.c.b16 %v1911, %v1910
      %v1951 = vpack.c.b16 %v1913, %v1912
      %v1952 = vpack.c.b16 %v1915, %v1914
      %v1953 = vpack.c.b16 %v1917, %v1916
      %v1990 = vsel %vm952, %v1515, 0
      %v1992 = vsel %vm952, %v1518, 0
      %v1994 = vsel %vm952, %v1521, 0
      %v1996 = vsel %vm952, %v1524, 0
      %v1998 = vsel %vm952, %v1527, 0
      %v2000 = vsel %vm952, %v1530, 0
      %v2003 = vsel %vm952, %v1563, 0
      %v2006 = vsel %vm952, %v1600, 0
      %2008 = vmatprep.subr.bf16.mxu0 0
      %2009 = vmatpush1.bf16.msra.mxu0 %v1925
      %2010 = vmatprep.subr.bf16.mxu0 0
      %2011 = vmatpush1.bf16.msra.mxu0 %v1924
      %2012 = vmatprep.subr.bf16.mxu0 0
      %2013 = vmatpush1.bf16.msra.mxu0 %v1923
      %2014 = vmatprep.subr.bf16.mxu0 0
      %2015 = vmatpush1.bf16.msra.mxu0 %v1922
      %2016 = vmatprep.subr.bf16.mxu0 0
      %2017 = vmatpush1.bf16.msra.mxu0 %v1921
      %2018 = vmatprep.subr.bf16.mxu0 0
      %2019 = vmatpush1.bf16.msra.mxu0 %v1920
      %2020 = vmatprep.subr.bf16.mxu0 0
      %2021 = vmatpush1.bf16.msra.mxu0 %v1919
      %2022 = vmatprep.subr.bf16.mxu0 0
      %2023 = vmatpush1.bf16.msra.mxu0 %v1918
      %2024 = vmatprep.subr.bf16.mxu0 0
      %2025 = vmatpush2.bf16.msra.mxu0 %v1933
      %2026 = vmatprep.subr.bf16.mxu0 0
      %2027 = vmatpush2.bf16.msra.mxu0 %v1932
      %2028 = vmatprep.subr.bf16.mxu0 0
      %2029 = vmatpush2.bf16.msra.mxu0 %v1931
      %2030 = vmatprep.subr.bf16.mxu0 0
      %2031 = vmatpush2.bf16.msra.mxu0 %v1930
      %2032 = vmatprep.subr.bf16.mxu0 0
      %2033 = vmatpush2.bf16.msra.mxu0 %v1929
      %2034 = vmatprep.subr.bf16.mxu0 0
      %2035 = vmatpush2.bf16.msra.mxu0 %v1928
      %2036 = vmatprep.subr.bf16.mxu0 0
      %2037 = vmatpush2.bf16.msra.mxu0 %v1927
      %2038 = vmatprep.subr.bf16.mxu0 0
      %2039 = vmatpush2.bf16.msra.mxu0 %v1926
      %2040 = vmatprep.mubr.bf16.mxu0 %v1627
      %2041 = vmatmul.mubr.bf16.gmra.mxu0 %v1602
      %v2042 = vpop.f32.mrf.mxu0
      %v2043 = vadd.f32 %v1772, %v2042
      %v2044 = vpop.f32.mrf.mxu0
      %v2045 = vpop.f32.mrf.mxu0
      %v2046 = vadd.f32 %v1772, %v2045
      %v2047 = vpop.f32.mrf.mxu0
      %2048 = vmatprep.mubr.bf16.mxu0 %v1631
      %2049 = vmatmul.mubr.bf16.gmra.mxu0 %v1605
      %v2050 = vpop.f32.mrf.mxu0
      %v2051 = vadd.f32 %v1772, %v2050
      %v2052 = vpop.f32.mrf.mxu0
      %v2053 = vpop.f32.mrf.mxu0
      %v2054 = vadd.f32 %v1772, %v2053
      %v2055 = vpop.f32.mrf.mxu0
      %2056 = vmatprep.mubr.bf16.mxu0 %v1635
      %2057 = vmatmul.mubr.bf16.gmra.mxu0 %v1608
      %v2058 = vpop.f32.mrf.mxu0
      %v2059 = vadd.f32 %v1772, %v2058
      %v2060 = vpop.f32.mrf.mxu0
      %v2061 = vpop.f32.mrf.mxu0
      %v2062 = vadd.f32 %v1772, %v2061
      %v2063 = vpop.f32.mrf.mxu0
      %2064 = vmatprep.mubr.bf16.mxu0 %v1639
      %2065 = vmatmul.mubr.bf16.gmra.mxu0 %v1611
      %v2066 = vpop.f32.mrf.mxu0
      %v2067 = vadd.f32 %v1772, %v2066
      %v2068 = vpop.f32.mrf.mxu0
      %v2069 = vpop.f32.mrf.mxu0
      %v2070 = vadd.f32 %v1772, %v2069
      %v2071 = vpop.f32.mrf.mxu0
      %2072 = vmatprep.mubr.bf16.mxu0 %v1643
      %2073 = vmatmul.mubr.bf16.gmra.mxu0 %v1614
      %v2074 = vpop.f32.mrf.mxu0
      %v2075 = vadd.f32 %v1772, %v2074
      %v2076 = vpop.f32.mrf.mxu0
      %v2077 = vpop.f32.mrf.mxu0
      %v2078 = vadd.f32 %v1772, %v2077
      %v2079 = vpop.f32.mrf.mxu0
      %2080 = vmatprep.mubr.bf16.mxu0 %v1647
      %2081 = vmatmul.mubr.bf16.gmra.mxu0 %v1617
      %v2082 = vpop.f32.mrf.mxu0
      %v2083 = vadd.f32 %v1772, %v2082
      %v2084 = vpop.f32.mrf.mxu0
      %v2085 = vpop.f32.mrf.mxu0
      %v2086 = vadd.f32 %v1772, %v2085
      %v2087 = vpop.f32.mrf.mxu0
      %2088 = vmatprep.mubr.bf16.mxu0 %v1651
      %2089 = vmatmul.mubr.bf16.gmra.mxu0 %v1620
      %v2090 = vpop.f32.mrf.mxu0
      %v2091 = vadd.f32 %v1772, %v2090
      %v2092 = vpop.f32.mrf.mxu0
      %v2093 = vpop.f32.mrf.mxu0
      %v2094 = vadd.f32 %v1772, %v2093
      %v2095 = vpop.f32.mrf.mxu0
      %2096 = vmatprep.mubr.bf16.mxu0 %v1655
      %2097 = vmatmul.mubr.bf16.gmra.mxu0 %v1623
      %v2098 = vpop.f32.mrf.mxu0
      %v2099 = vadd.f32 %v1772, %v2098
      %v2100 = vpop.f32.mrf.mxu0
      %v2101 = vpop.f32.mrf.mxu0
      %v2102 = vadd.f32 %v1772, %v2101
      %v2103 = vpop.f32.mrf.mxu0
      %2104 = vdwg.mxu0
      %2105 = vmatprep.subr.bf16.mxu0 0
      %2106 = vmatpush1.bf16.msra.mxu0 %v1941
      %2107 = vmatprep.subr.bf16.mxu0 0
      %2108 = vmatpush1.bf16.msra.mxu0 %v1940
      %2109 = vmatprep.subr.bf16.mxu0 0
      %2110 = vmatpush1.bf16.msra.mxu0 %v1939
      %2111 = vmatprep.subr.bf16.mxu0 0
      %2112 = vmatpush1.bf16.msra.mxu0 %v1938
      %2113 = vmatprep.subr.bf16.mxu0 0
      %2114 = vmatpush1.bf16.msra.mxu0 %v1937
      %2115 = vmatprep.subr.bf16.mxu0 0
      %2116 = vmatpush1.bf16.msra.mxu0 %v1936
      %2117 = vmatprep.subr.bf16.mxu0 0
      %2118 = vmatpush1.bf16.msra.mxu0 %v1935
      %2119 = vmatprep.subr.bf16.mxu0 0
      %2120 = vmatpush1.bf16.msra.mxu0 %v1934
      %2121 = vmatprep.subr.bf16.mxu0 0
      %2122 = vmatpush2.bf16.msra.mxu0 %v1949
      %2123 = vmatprep.subr.bf16.mxu0 0
      %2124 = vmatpush2.bf16.msra.mxu0 %v1948
      %2125 = vmatprep.subr.bf16.mxu0 0
      %2126 = vmatpush2.bf16.msra.mxu0 %v1947
      %2127 = vmatprep.subr.bf16.mxu0 0
      %2128 = vmatpush2.bf16.msra.mxu0 %v1946
      %2129 = vmatprep.subr.bf16.mxu0 0
      %2130 = vmatpush2.bf16.msra.mxu0 %v1945
      %2131 = vmatprep.subr.bf16.mxu0 0
      %2132 = vmatpush2.bf16.msra.mxu0 %v1944
      %2133 = vmatprep.subr.bf16.mxu0 0
      %2134 = vmatpush2.bf16.msra.mxu0 %v1943
      %2135 = vmatprep.subr.bf16.mxu0 0
      %2136 = vmatpush2.bf16.msra.mxu0 %v1942
      %2137 = vmatprep.mubr.bf16.mxu0 %v1608
      %2138 = vmatmul.mubr.bf16.gmra.mxu0 %v1659
      %v2139 = vpop.f32.mrf.mxu0
      %v2140 = vadd.f32 %v2043, %v2139
      %v2141 = vpop.f32.mrf.mxu0
      %v2142 = vpop.f32.mrf.mxu0
      %v2143 = vadd.f32 %v2046, %v2142
      %v2144 = vpop.f32.mrf.mxu0
      %2145 = vmatprep.mubr.bf16.mxu0 %v1611
      %2146 = vmatmul.mubr.bf16.gmra.mxu0 %v1663
      %v2147 = vpop.f32.mrf.mxu0
      %v2148 = vadd.f32 %v2051, %v2147
      %v2149 = vpop.f32.mrf.mxu0
      %v2150 = vpop.f32.mrf.mxu0
      %v2151 = vadd.f32 %v2054, %v2150
      %v2152 = vpop.f32.mrf.mxu0
      %2153 = vmatprep.mubr.bf16.mxu0 %v1614
      %2154 = vmatmul.mubr.bf16.gmra.mxu0 %v1667
      %v2155 = vpop.f32.mrf.mxu0
      %v2156 = vadd.f32 %v2059, %v2155
      %v2157 = vpop.f32.mrf.mxu0
      %v2158 = vpop.f32.mrf.mxu0
      %v2159 = vadd.f32 %v2062, %v2158
      %v2160 = vpop.f32.mrf.mxu0
      %2161 = vmatprep.mubr.bf16.mxu0 %v1617
      %2162 = vmatmul.mubr.bf16.gmra.mxu0 %v1671
      %v2163 = vpop.f32.mrf.mxu0
      %v2164 = vadd.f32 %v2067, %v2163
      %v2165 = vpop.f32.mrf.mxu0
      %v2166 = vpop.f32.mrf.mxu0
      %v2167 = vadd.f32 %v2070, %v2166
      %v2168 = vpop.f32.mrf.mxu0
      %2169 = vmatprep.mubr.bf16.mxu0 %v1620
      %2170 = vmatmul.mubr.bf16.gmra.mxu0 %v1675
      %v2171 = vpop.f32.mrf.mxu0
      %v2172 = vadd.f32 %v2075, %v2171
      %v2173 = vpop.f32.mrf.mxu0
      %v2174 = vpop.f32.mrf.mxu0
      %v2175 = vadd.f32 %v2078, %v2174
      %v2176 = vpop.f32.mrf.mxu0
      %2177 = vmatprep.mubr.bf16.mxu0 %v1623
      %2178 = vmatmul.mubr.bf16.gmra.mxu0 %v1679
      %v2179 = vpop.f32.mrf.mxu0
      %v2180 = vadd.f32 %v2083, %v2179
      %v2181 = vpop.f32.mrf.mxu0
      %v2182 = vpop.f32.mrf.mxu0
      %v2183 = vadd.f32 %v2086, %v2182
      %v2184 = vpop.f32.mrf.mxu0
      %2185 = vmatprep.mubr.bf16.mxu0 %v1690
      %2186 = vmatmul.mubr.bf16.gmra.mxu0 %v1683
      %v2187 = vpop.f32.mrf.mxu0
      %v2188 = vadd.f32 %v2091, %v2187
      %v2189 = vpop.f32.mrf.mxu0
      %v2190 = vpop.f32.mrf.mxu0
      %v2191 = vadd.f32 %v2094, %v2190
      %v2192 = vpop.f32.mrf.mxu0
      %2193 = vmatprep.mubr.bf16.mxu0 %v1693
      %2194 = vmatmul.mubr.bf16.gmra.mxu0 %v1687
      %v2195 = vpop.f32.mrf.mxu0
      %v2196 = vadd.f32 %v2099, %v2195
      %v2197 = vpop.f32.mrf.mxu0
      %v2198 = vpop.f32.mrf.mxu0
      %v2199 = vadd.f32 %v2102, %v2198
      %v2200 = vpop.f32.mrf.mxu0
      %2201 = vdwg.mxu0
      %2202 = vmatprep.subr.bf16.mxu0 0
      %2203 = vmatpush1.bf16.msra.mxu0 0
      %2204 = vmatprep.subr.bf16.mxu0 0
      %2205 = vmatpush1.bf16.msra.mxu0 0
      %2206 = vmatprep.subr.bf16.mxu0 0
      %2207 = vmatpush1.bf16.msra.mxu0 0
      %2208 = vmatprep.subr.bf16.mxu0 0
      %2209 = vmatpush1.bf16.msra.mxu0 0
      %2210 = vmatprep.subr.bf16.mxu0 0
      %2211 = vmatpush1.bf16.msra.mxu0 %v1953
      %2212 = vmatprep.subr.bf16.mxu0 0
      %2213 = vmatpush1.bf16.msra.mxu0 %v1952
      %2214 = vmatprep.subr.bf16.mxu0 0
      %2215 = vmatpush1.bf16.msra.mxu0 %v1951
      %2216 = vmatprep.subr.bf16.mxu0 0
      %2217 = vmatpush1.bf16.msra.mxu0 %v1950
      %2218 = vmatprep.subr.bf16.mxu0 0
      %2219 = vmatpush2.bf16.msra.mxu0 0
      %2220 = vmatprep.subr.bf16.mxu0 0
      %2221 = vmatpush2.bf16.msra.mxu0 0
      %2222 = vmatprep.subr.bf16.mxu0 0
      %2223 = vmatpush2.bf16.msra.mxu0 0
      %2224 = vmatprep.subr.bf16.mxu0 0
      %2225 = vmatpush2.bf16.msra.mxu0 0
      %2226 = vmatprep.subr.bf16.mxu0 0
      %2227 = vmatpush2.bf16.msra.mxu0 0
      %2228 = vmatprep.subr.bf16.mxu0 0
      %2229 = vmatpush2.bf16.msra.mxu0 0
      %2230 = vmatprep.subr.bf16.mxu0 0
      %2231 = vmatpush2.bf16.msra.mxu0 0
      %2232 = vmatprep.subr.bf16.mxu0 0
      %2233 = vmatpush2.bf16.msra.mxu0 0
      %2234 = vmatprep.mubr.bf16.mxu0 0
      %2235 = vmatmul.mubr.bf16.gmra.mxu0 %v1990
      %v2236 = vpop.f32.mrf.mxu0
      %v2237 = vadd.f32 %v2140, %v2236
      %v2238 = vpop.f32.mrf.mxu0
      %v2239 = vpop.f32.mrf.mxu0
      %v2240 = vadd.f32 %v2143, %v2239
      %v2241 = vpop.f32.mrf.mxu0
      %2242 = vmatprep.mubr.bf16.mxu0 0
      %2243 = vmatmul.mubr.bf16.gmra.mxu0 %v1992
      %v2244 = vpop.f32.mrf.mxu0
      %v2245 = vadd.f32 %v2148, %v2244
      %v2246 = vpop.f32.mrf.mxu0
      %v2247 = vpop.f32.mrf.mxu0
      %v2248 = vadd.f32 %v2151, %v2247
      %v2249 = vpop.f32.mrf.mxu0
      %2250 = vmatprep.mubr.bf16.mxu0 0
      %2251 = vmatmul.mubr.bf16.gmra.mxu0 %v1994
      %v2252 = vpop.f32.mrf.mxu0
      %v2253 = vadd.f32 %v2156, %v2252
      %v2254 = vpop.f32.mrf.mxu0
      %v2255 = vpop.f32.mrf.mxu0
      %v2256 = vadd.f32 %v2159, %v2255
      %v2257 = vpop.f32.mrf.mxu0
      %2258 = vmatprep.mubr.bf16.mxu0 0
      %2259 = vmatmul.mubr.bf16.gmra.mxu0 %v1996
      %v2260 = vpop.f32.mrf.mxu0
      %v2261 = vadd.f32 %v2164, %v2260
      %v2262 = vpop.f32.mrf.mxu0
      %v2263 = vpop.f32.mrf.mxu0
      %v2264 = vadd.f32 %v2167, %v2263
      %v2265 = vpop.f32.mrf.mxu0
      %2266 = vmatprep.mubr.bf16.mxu0 0
      %2267 = vmatmul.mubr.bf16.gmra.mxu0 %v1998
      %v2268 = vpop.f32.mrf.mxu0
      %v2269 = vadd.f32 %v2172, %v2268
      %v2270 = vpop.f32.mrf.mxu0
      %v2271 = vpop.f32.mrf.mxu0
      %v2272 = vadd.f32 %v2175, %v2271
      %v2273 = vpop.f32.mrf.mxu0
      %2274 = vmatprep.mubr.bf16.mxu0 0
      %2275 = vmatmul.mubr.bf16.gmra.mxu0 %v2000
      %v2276 = vpop.f32.mrf.mxu0
      %v2277 = vadd.f32 %v2180, %v2276
      %v2278 = vpop.f32.mrf.mxu0
      %v2279 = vpop.f32.mrf.mxu0
      %v2280 = vadd.f32 %v2183, %v2279
      %v2281 = vpop.f32.mrf.mxu0
      %2282 = vmatprep.mubr.bf16.mxu0 0
      %2283 = vmatmul.mubr.bf16.gmra.mxu0 %v2003
      %v2284 = vpop.f32.mrf.mxu0
      %v2285 = vadd.f32 %v2188, %v2284
      %v2286 = vpop.f32.mrf.mxu0
      %v2287 = vpop.f32.mrf.mxu0
      %v2288 = vadd.f32 %v2191, %v2287
      %v2289 = vpop.f32.mrf.mxu0
      %2290 = vmatprep.mubr.bf16.mxu0 0
      %2291 = vmatmul.mubr.bf16.gmra.mxu0 %v2006
      %v2292 = vpop.f32.mrf.mxu0
      %v2293 = vadd.f32 %v2196, %v2292
      %v2294 = vpop.f32.mrf.mxu0
      %v2295 = vpop.f32.mrf.mxu0
      %v2296 = vadd.f32 %v2199, %v2295
      %v2297 = vpop.f32.mrf.mxu0
      %2298 = vdwg.mxu0
      %v2299 = vmax.f32 %v2237, 0.0
      %v2300 = vmax.f32 %v2240, 0.0
      %v2301 = vmax.f32 %v2245, 0.0
      %v2302 = vmax.f32 %v2248, 0.0
      %v2303 = vmax.f32 %v2253, 0.0
      %v2304 = vmax.f32 %v2256, 0.0
      %v2305 = vmax.f32 %v2261, 0.0
      %v2306 = vmax.f32 %v2264, 0.0
      %v2307 = vmax.f32 %v2269, 0.0
      %v2308 = vmax.f32 %v2272, 0.0
      %v2309 = vmax.f32 %v2277, 0.0
      %v2310 = vmax.f32 %v2280, 0.0
      %v2311 = vmax.f32 %v2285, 0.0
      %v2312 = vmax.f32 %v2288, 0.0
      %v2313 = vmax.f32 %v2293, 0.0
      %v2314 = vmax.f32 %v2296, 0.0
      %v2315 = vpack.c.bf16 %v2300, %v2299
      %v2316 = vpack.c.bf16 %v2302, %v2301
      %v2317 = vpack.c.bf16 %v2304, %v2303
      %v2318 = vpack.c.bf16 %v2306, %v2305
      %v2319 = vpack.c.bf16 %v2308, %v2307
      %v2320 = vpack.c.bf16 %v2310, %v2309
      %v2321 = vpack.c.bf16 %v2312, %v2311
      %v2322 = vpack.c.bf16 %v2314, %v2313
      %v2331 = vunpack.c.l.b16 %v2315
      %v2332 = vunpack.c.h.b16 %v2315
      %v2333 = vunpack.c.l.b16 %v2316
      %v2334 = vunpack.c.h.b16 %v2316
      %v2335 = vunpack.c.l.b16 %v2317
      %v2336 = vunpack.c.h.b16 %v2317
      %v2337 = vunpack.c.l.b16 %v2318
      %v2338 = vunpack.c.h.b16 %v2318
      %v2339 = vunpack.c.l.b16 %v2319
      %v2340 = vunpack.c.h.b16 %v2319
      %v2341 = vunpack.c.l.b16 %v2320
      %v2342 = vunpack.c.h.b16 %v2320
      %v2343 = vunpack.c.l.b16 %v2321
      %v2344 = vunpack.c.h.b16 %v2321
      %v2345 = vunpack.c.l.b16 %v2322
      %v2346 = vunpack.c.h.b16 %v2322
      %v2347 = vpack.c.b16 %v2331, %v2331
      %v2348 = vpack.c.b16 %v2332, %v2332
      %v2349 = vpack.c.b16 %v2333, %v2333
      %v2350 = vpack.c.b16 %v2334, %v2334
      %v2351 = vpack.c.b16 %v2335, %v2335
      %v2352 = vpack.c.b16 %v2336, %v2336
      %v2353 = vpack.c.b16 %v2337, %v2337
      %v2354 = vpack.c.b16 %v2338, %v2338
      %v2355 = vpack.c.b16 %v2339, %v2339
      %v2356 = vpack.c.b16 %v2340, %v2340
      %v2357 = vpack.c.b16 %v2341, %v2341
      %v2358 = vpack.c.b16 %v2342, %v2342
      %v2359 = vpack.c.b16 %v2343, %v2343
      %v2360 = vpack.c.b16 %v2344, %v2344
      %v2361 = vpack.c.b16 %v2345, %v2345
      %v2362 = vpack.c.b16 %v2346, %v2346
      %vm2379 = vcmask 519168
      %2380 = vst.msk [vmem:[%s328] sm:$0xf] %vm2379, %v2347
      %2381 = vst.msk [vmem:[%s328 + $0x4] sm:$0xf] %vm2379, %v2348
      %2382 = vst.msk [vmem:[%s328 + $0x8] sm:$0xf] %vm2379, %v2349
      %2383 = vst.msk [vmem:[%s328 + $0xc] sm:$0xf] %vm2379, %v2350
      %2384 = vst.msk [vmem:[%s328 + $0x10] sm:$0xf] %vm2379, %v2351
      %2385 = vst.msk [vmem:[%s328 + $0x14] sm:$0xf] %vm2379, %v2352
      %2386 = vst.msk [vmem:[%s328 + $0x18] sm:$0xf] %vm2379, %v2353
      %2387 = vst.msk [vmem:[%s328 + $0x1c] sm:$0xf] %vm2379, %v2354
      %2388 = vst.msk [vmem:[%s328 + $0x20] sm:$0xf] %vm2379, %v2355
      %2389 = vst.msk [vmem:[%s328 + $0x24] sm:$0xf] %vm2379, %v2356
      %2390 = vst.msk [vmem:[%s328 + $0x28] sm:$0xf] %vm2379, %v2357
      %2391 = vst.msk [vmem:[%s328 + $0x2c] sm:$0xf] %vm2379, %v2358
      %2392 = vst.msk [vmem:[%s328 + $0x30] sm:$0xf] %vm2379, %v2359
      %2393 = vst.msk [vmem:[%s328 + $0x34] sm:$0xf] %vm2379, %v2360
      %2394 = vst.msk [vmem:[%s328 + $0x38] sm:$0xf] %vm2379, %v2361
      %2395 = vst.msk [vmem:[%s328 + $0x3c] sm:$0xf] %vm2379, %v2362
      %s2396 = smul.u32 8, %s22
      %p2397 = scmp.lt.s32.totalorder %s21, 1
      %s2398 = scalar_select %p2397, %s21, 1
      %p2399 = scmp.lt.s32.totalorder %s2396, 15
      %s2400 = scalar_select %p2399, %s2396, 15
      %s2401 = smul.addr %s2400, 2
      %s2402 = smul.addr %s2398, 32
      %s2403 = sadd.s32 %s2401, %s2402
      %s2404 = smul.addr %s2403, 4
      %s2405 = scalar_lea.vmem %s6, %s2404
      // Predicated region
      $region45: #{_lambda_.1} parent=43 // pred_check
        %p2406 = pneg %p191
      $region46: #{_lambda_.1} parent=43 // pred_check_branch
        %2408 = sbr.rel (%p2406) target = $region48
      $region47: #{_lambda_.1} parent=43 // pred_region
        %s2409 = smul.u32 8, %s22
      $region48: #{_lambda_.1} parent=43 // pred_fallthru
        _
    $region44: #{_lambda_.1} parent=5 // pred_fallthru
      _
    %p2410 = scmp.le.s32.totalorder 2, %s12
    // Predicated region
    $region49: #{_lambda_.1} parent=5 // pred_check
      %p2411 = pneg %p2410
    $region50: #{_lambda_.1} parent=5 // pred_check_branch
      %2413 = sbr.rel (%p2411) target = $region52
    $region51: #{_lambda_.1} parent=5 // pred_region
      %s2414 = ssub.s32 %s12, 2
      // Predicated region
      $region53: #{_lambda_.1} parent=51 // pred_check
        %p2415 = pneg %p197
      $region54: #{_lambda_.1} parent=51 // pred_check_branch
        %2417 = sbr.rel (%p2415) target = $region56
      $region55: #{_lambda_.1} parent=51 // pred_region
        %s2418 = smul.u32 8, %s24
        %p2419 = scmp.lt.s32.totalorder %s23, 1
        %s2420 = scalar_select %p2419, %s23, 1
        %p2421 = scmp.lt.s32.totalorder %s2418, 15
        %s2422 = scalar_select %p2421, %s2418, 15
        %s2423 = smul.addr %s2422, 2
        %s2424 = smul.addr %s2420, 32
        %s2425 = sadd.s32 %s2423, %s2424
        %s2426 = smul.addr %s2425, 4
        %s2427 = scalar_lea.vmem %s6, %s2426
      $region56: #{_lambda_.1} parent=51 // pred_fallthru
        _
    $region52: #{_lambda_.1} parent=5 // pred_fallthru
      _
  $region6: #{_lambda_.1} parent=0 // loop_footer
    %s16 = sadd.s32 1, %s12
  $region7: #{_lambda_.1} parent=0 // loop_footer_branch
    %11 = sbr.rel target = $region3
  $region8: #{_lambda_.1} parent=0 // loop_exit
    _

</llo_original>
